<compile_context>
chip_gen: v6e
topology: v6e:2x2x1
jax: 0.10.0
libtpu: 0.0.40
codegen_flags: <defaults>
</compile_context>

<pallas_src>
import jax
import jax.numpy as jnp
from jax.experimental import pallas as pl
from jax.experimental.pallas import tpu as pltpu

# ---- static sizes (consistent with the module defaults) ----
D_IN = 6          # encoder input_dim (fixed by build_encoder)
D_PAD = 8         # padded feature dim (col 6 = 1.0 bias feature, col 7 = 0)
H = 32            # d_model
G3 = 3 * H        # concatenated gate width [r|z|n] = 96
T = 8             # sequence length
B = 2             # batch
B_PAD = 8         # padded batch
M = 16            # n_inducing
OUT_LANES = 128   # lane-dense output slab width
LN_EPS = 1e-5
SQRT5 = 5.0 ** 0.5
JITTER = 1e-6

# ---- packed GRU weight-slab layout (lane width 192) ----
W_LANES = 2 * G3            # 192
R_WIH0 = 0                  # rows 0:8   [wih0 | 0] ; row D_IN carries the folded layer-0 bias
R_W01 = D_PAD               # rows 8:40  fused [wih1_rz | whh0_rz | wih1_n | whh0_n]
R_WHH1 = R_W01 + H          # rows 40:72 [whh1 (r|z|n) | 0]
R_TAIL = R_WHH1 + H         # rows 72:80 row0: b01, row1: b1 (gh1 bias), row2: [ln_gamma | ln_beta]
W_ROWS = R_TAIL + 8         # 80

# ---- packed GP slab layout (lane width M) ----
G_ZT = 0                    # rows 0:32  Z^T
G_TAIL = H                  # rows 32:40 zi_sq, v_eff, c_a, c_b, c_c, out_bias, 0, 0
G_ROWS = G_TAIL + 8         # 40


def _sigmoid(x):
    # identical formula in kernel and reference (exp is supported everywhere)
    return 1.0 / (1.0 + jnp.exp(-x))


# ----------------------------- fused Pallas kernel -----------------------------

def fused_forward_kernel(x_ref, w_ref, gp_ref, out_ref):
    """x_ref : (T*B_PAD, D_PAD) time-major input, col D_IN == 1.0 (bias feature)
       w_ref : (W_ROWS, W_LANES) packed GRU weights / biases / LayerNorm affine
       gp_ref: (G_ROWS, M)       packed SVGP head
       out_ref: (B_PAD, OUT_LANES) lane-dense output slab"""
    f32 = jnp.float32
    bf16 = jnp.bfloat16

    # ---- unpack parameter slabs (one-time static slices, off the recurrence chain) ----
    wih0 = w_ref[R_WIH0:R_WIH0 + D_PAD, 0:G3]                 # (8, 96)  f32
    w01 = w_ref[R_W01:R_W01 + H, :].astype(bf16)              # (32, 192) fused RHS (bf16 at MXU)
    whh1 = w_ref[R_WHH1:R_WHH1 + H, 0:G3].astype(bf16)        # (32, 96)
    tail = w_ref[R_TAIL:R_TAIL + 8, :]                        # (8, 192) f32
    b01 = tail[0:1, :]                                        # (1, 192) fused-matmul bias
    b1 = tail[1:2, 0:G3]                                      # (1, 96)  gh1 bias (n cols only)
    ln_g = tail[2:3, 0:H]                                     # (1, 32)
    ln_b = tail[2:3, H:2 * H]                                 # (1, 32)

    # ---- hoisted layer-0 input projection for all T steps (bias folded via ones column) ----
    gi0_all = jnp.dot(x_ref[...], wih0, preferred_element_type=f32)       # (T*B_PAD, 96)

    # ---- 2-layer GRU recurrence, T = 8 fully unrolled ----
    h0 = jnp.zeros((B_PAD, H), f32)
    h1 = jnp.zeros((B_PAD, H), f32)
    # layer-0 hidden-gate pre-activations at t=0 (h0_prev = 0):
    #   r/z part is bias-free (bhh0_rz folded into gi0), n part = bhh0_n
    gh0_rz = jnp.zeros((B_PAD, 2 * H), f32)
    gh0_n = jnp.broadcast_to(b01[:, 5 * H:6 * H], (B_PAD, H))

    for t in range(T):
        # ----- layer-0 cell (elementwise only; gh0 came from last step's fused matmul) -----
        gi0 = gi0_all[t * B_PAD:(t + 1) * B_PAD, :]
        rz0 = _sigmoid(gi0[:, 0:2 * H] + gh0_rz)                          # [r0 | z0] one EUP pass
        n0 = jnp.tanh(gi0[:, 2 * H:G3] + rz0[:, 0:H] * gh0_n)
        z0 = rz0[:, H:2 * H]
        h0 = (1.0 - z0) * n0 + z0 * h0

        # ----- fused matmul: h0(t) @ [wih1_rz|whh0_rz|wih1_n|whh0_n] -> gi1(t), gh0(t+1) -----
        out01 = jnp.dot(h0.astype(bf16), w01, preferred_element_type=f32) + b01   # (B_PAD, 192)
        gi1_rz = out01[:, 0:2 * H]          # lanes   0: 64
        gh0_rz = out01[:, 2 * H:4 * H]      # lanes  64:128
        gi1_n = out01[:, 4 * H:5 * H]       # lanes 128:160
        gh0_n = out01[:, 5 * H:6 * H]       # lanes 160:192

        # ----- layer-1 cell (gh1 needs only h1(t-1) -> overlaps with the fused matmul) -----
        gh1 = jnp.dot(h1.astype(bf16), whh1, preferred_element_type=f32) + b1     # (B_PAD, 96)
        rz1 = _sigmoid(gi1_rz + gh1[:, 0:2 * H])
        n1 = jnp.tanh(gi1_n + rz1[:, 0:H] * gh1[:, 2 * H:G3])
        z1 = rz1[:, H:2 * H]
        h1 = (1.0 - z1) * n1 + z1 * h1
        # inter-layer dropout is identity in eval mode

    # ---- LayerNorm(d_model), biased variance, eps = 1e-5 ----
    mu = jnp.mean(h1, axis=-1, keepdims=True)
    var = jnp.mean((h1 - mu) ** 2, axis=-1, keepdims=True)
    z = (h1 - mu) * jax.lax.rsqrt(var + LN_EPS) * ln_g + ln_b             # (B_PAD, 32)

    # ---- whitened-SVGP predictive mean + likelihood mean + de-normalization (all f32) ----
    zt = gp_ref[G_ZT:G_ZT + H, :]                                         # (32, 16)
    gtail = gp_ref[G_TAIL:G_TAIL + 8, :]                                  # (8, 16)
    zi_sq = gtail[0:1, :]          # ||z_i||^2
    v_eff = gtail[1:2, :]          # outputscale * y_std * L^{-T} m
    c_a = gtail[2:3, :]            # sqrt(5) / l_matern
    c_b = gtail[3:4, :]            # (5/3) / l_matern^2
    c_c = gtail[4:5, :]            # -0.5 / l_rbf^2
    out_b = gtail[5:6, 0:1]        # const_mean * y_std + y_mean

    z_sq = jnp.sum(z * z, axis=-1, keepdims=True)                         # (B_PAD, 1)
    zzT = jnp.dot(z, zt, preferred_element_type=f32)                      # (B_PAD, 16)
    d2 = jnp.maximum(z_sq + zi_sq - 2.0 * zzT, 0.0)
    d = jnp.sqrt(d2)
    a = c_a * d
    k = (1.0 + a + c_b * d2) * jnp.exp(-a) + jnp.exp(c_c * d2)            # Matern-2.5 + RBF

    # tail matvec as VPU multiply + lane reduce (no MXU push/drain at the very end)
    pred = jnp.sum(k * v_eff, axis=-1, keepdims=True) + out_b             # (B_PAD, 1)
    out_ref[...] = jnp.broadcast_to(pred, (B_PAD, OUT_LANES))


# ------------------------------ JAX wrapper ------------------------------

_VMEM = pl.BlockSpec(memory_space=pltpu.MemorySpace.VMEM)


def residual_model_svgp_forward(x, params):
    """x: (B, T, D_IN) float32, batch_first like the PyTorch module. Returns (B, 1)."""
    nb = x.shape[0]
    # single pad + transpose; the ones column (feature D_IN) folds the layer-0 biases into
    # the hoisted input projection inside the kernel
    x_tm = jnp.pad(jnp.transpose(x, (1, 0, 2)), ((0, 0), (0, B_PAD - nb), (0, 0)))
    ones = jnp.ones((T, B_PAD, 1), jnp.float32)
    zero = jnp.zeros((T, B_PAD, D_PAD - D_IN - 1), jnp.float32)
    x_flat = jnp.concatenate([x_tm, ones, zero], axis=-1).reshape(T * B_PAD, D_PAD)

    out = pl.pallas_call(
        fused_forward_kernel,
        out_shape=jax.ShapeDtypeStruct((B_PAD, OUT_LANES), jnp.float32),
        in_specs=[_VMEM, _VMEM, _VMEM],
        out_specs=_VMEM,
    )(x_flat, params['w_slab'], params['gp_slab'])
    return out[:nb, :1]      # (B, 1) = pred_norm * y_std + y_mean


# --------------------------- parameter construction ---------------------------

def _kernel_matrix(Z, outputscale, l_m, l_r):
    """ScaleKernel(Matern2.5 + RBF) on inducing points — plain-JAX parameter setup."""
    d2 = jnp.maximum(jnp.sum((Z[:, None, :] - Z[None, :, :]) ** 2, axis=-1), 0.0)
    d = jnp.sqrt(d2)
    km = (1.0 + SQRT5 * d / l_m + (5.0 / 3.0) * d2 / (l_m * l_m)) * jnp.exp(-SQRT5 * d / l_m)
    kr = jnp.exp(-0.5 * d2 / (l_r * l_r))
    return outputscale * (km + kr)


def init_params(key):
    ks = jax.random.split(key, 10)
    s = 1.0 / jnp.sqrt(jnp.float32(H))   # PyTorch-style scale magnitude (normals, not uniform)

    def w(k, shape):
        return s * jax.random.normal(k, shape, jnp.float32)

    # raw gate-major GRU parameters, gate order [r, z, n] (PyTorch convention)
    wih0 = w(ks[0], (3, D_IN, H)); whh0 = w(ks[1], (3, H, H))
    bih0 = w(ks[2], (3, H));       bhh0 = w(ks[3], (3, H))
    wih1 = w(ks[4], (3, H, H));    whh1 = w(ks[5], (3, H, H))
    bih1 = w(ks[6], (3, H));       bhh1 = w(ks[7], (3, H))
    ln_gamma = jnp.ones((H,), jnp.float32)
    ln_beta = jnp.zeros((H,), jnp.float32)

    # GP parameters (lengthscales chosen so kernel values are non-degenerate for random Z)
    Z = jax.random.normal(ks[8], (M, H), jnp.float32)
    m_var = 0.3 * jax.random.normal(ks[9], (M,), jnp.float32)    # whitened variational mean
    outputscale = jnp.float32(0.5)
    l_m = jnp.float32(6.0)
    l_r = jnp.float32(5.0)
    const_mean = jnp.float32(0.1)
    y_mean = jnp.float32(1.5)
    y_std = jnp.float32(2.0)

    # whitening: v = L^{-T} m with L = chol(K_zz + jitter I)   (parameter-only setup)
    Kzz = _kernel_matrix(Z, outputscale, l_m, l_r) + JITTER * jnp.eye(M, dtype=jnp.float32)
    L = jnp.linalg.cholesky(Kzz)
    v = jax.scipy.linalg.solve_triangular(L.T, m_var, lower=False)       # (M,)

    catw = lambda g: jnp.concatenate([g[0], g[1], g[2]], axis=-1)        # (·, 3H)

    # ---- packed GRU weight slab (W_ROWS, 192) ----
    blk0 = jnp.zeros((D_PAD, W_LANES), jnp.float32)
    blk0 = blk0.at[0:D_IN, 0:G3].set(catw(wih0))
    # folded layer-0 bias row (multiplied by the ones column of x): r/z get bih+bhh, n gets bih only
    blk0 = blk0.at[D_IN, 0:G3].set(
        jnp.concatenate([bih0[0] + bhh0[0], bih0[1] + bhh0[1], bih0[2]]))

    # fused RHS: [wih1_r | wih1_z | whh0_r | whh0_z | wih1_n | whh0_n]
    blk01 = jnp.concatenate([wih1[0], wih1[1], whh0[0], whh0[1], wih1[2], whh0[2]], axis=-1)

    blk1 = jnp.zeros((H, W_LANES), jnp.float32).at[:, 0:G3].set(catw(whh1))

    tail = jnp.zeros((8, W_LANES), jnp.float32)
    # b01 (fused-matmul bias): [bih1_rz + bhh1_rz | 0 | bih1_n | bhh0_n]
    tail = tail.at[0, 0:H].set(bih1[0] + bhh1[0])
    tail = tail.at[0, H:2 * H].set(bih1[1] + bhh1[1])
    tail = tail.at[0, 4 * H:5 * H].set(bih1[2])
    tail = tail.at[0, 5 * H:6 * H].set(bhh0[2])
    # b1 (gh1 bias): [0 | 0 | bhh1_n]
    tail = tail.at[1, 2 * H:G3].set(bhh1[2])
    # LayerNorm affine
    tail = tail.at[2, 0:H].set(ln_gamma)
    tail = tail.at[2, H:2 * H].set(ln_beta)

    w_slab = jnp.concatenate([blk0, blk01, blk1, tail], axis=0)          # (80, 192)

    # ---- packed GP slab (G_ROWS, 16) ----
    gtail = jnp.zeros((8, M), jnp.float32)
    gtail = gtail.at[0].set(jnp.sum(Z * Z, axis=-1))                     # ||z_i||^2
    gtail = gtail.at[1].set(outputscale * y_std * v)                     # v_eff
    gtail = gtail.at[2].set(jnp.full((M,), SQRT5 / l_m))
    gtail = gtail.at[3].set(jnp.full((M,), (5.0 / 3.0) / (l_m * l_m)))
    gtail = gtail.at[4].set(jnp.full((M,), -0.5 / (l_r * l_r)))
    gtail = gtail.at[5].set(jnp.full((M,), const_mean * y_std + y_mean))
    gp_slab = jnp.concatenate([Z.T, gtail], axis=0)                      # (40, 16)

    params = dict(w_slab=w_slab, gp_slab=gp_slab)
    raw = dict(wih0=wih0, whh0=whh0, bih0=bih0, bhh0=bhh0,
               wih1=wih1, whh1=whh1, bih1=bih1, bhh1=bhh1,
               ln_gamma=ln_gamma, ln_beta=ln_beta,
               Z=Z, v=v, outputscale=outputscale, l_m=l_m, l_r=l_r,
               const_mean=const_mean, y_mean=y_mean, y_std=y_std)
    return params, raw


# --------------------------- pure-JAX reference ---------------------------

def reference_forward(x, raw, mxu_dtype=jnp.float32):
    """Pure-JAX reference of the PyTorch forward. `mxu_dtype` is applied only to the
    recurrent h @ W matmul inputs (mirrors the kernel); everything else is f32."""
    hp = jax.lax.Precision.HIGHEST
    cat = lambda g: jnp.concatenate([g[0], g[1], g[2]], axis=-1)
    to = lambda a: a.astype(mxu_dtype)

    wih0, whh0 = cat(raw['wih0']), cat(raw['whh0'])
    wih1, whh1 = cat(raw['wih1']), cat(raw['whh1'])
    bih0, bhh0 = cat(raw['bih0']), cat(raw['bhh0'])
    bih1, bhh1 = cat(raw['bih1']), cat(raw['bhh1'])

    def cell(gi, h, whh, bhh):
        gh = jnp.dot(to(h), to(whh), preferred_element_type=jnp.float32, precision=hp) + bhh
        r = _sigmoid(gi[:, 0:H] + gh[:, 0:H])
        zg = _sigmoid(gi[:, H:2 * H] + gh[:, H:2 * H])
        n = jnp.tanh(gi[:, 2 * H:] + r * gh[:, 2 * H:])
        return (1.0 - zg) * n + zg * h

    nb = x.shape[0]
    h0 = jnp.zeros((nb, H), jnp.float32)
    h1 = jnp.zeros((nb, H), jnp.float32)
    for t in range(T):
        gi0 = jnp.dot(x[:, t, :], wih0, preferred_element_type=jnp.float32, precision=hp) + bih0
        h0 = cell(gi0, h0, whh0, bhh0)
        gi1 = jnp.dot(to(h0), to(wih1), preferred_element_type=jnp.float32, precision=hp) + bih1
        h1 = cell(gi1, h1, whh1, bhh1)

    mu = jnp.mean(h1, axis=-1, keepdims=True)
    var = jnp.mean((h1 - mu) ** 2, axis=-1, keepdims=True)
    z = (h1 - mu) * jax.lax.rsqrt(var + LN_EPS) * raw['ln_gamma'] + raw['ln_beta']

    d2 = jnp.maximum(jnp.sum((z[:, None, :] - raw['Z'][None, :, :]) ** 2, axis=-1), 0.0)
    d = jnp.sqrt(d2)
    l_m, l_r = raw['l_m'], raw['l_r']
    km = (1.0 + SQRT5 * d / l_m + (5.0 / 3.0) * d2 / (l_m * l_m)) * jnp.exp(-SQRT5 * d / l_m)
    kr = jnp.exp(-0.5 * d2 / (l_r * l_r))
    mean = raw['const_mean'] + raw['outputscale'] * jnp.sum((km + kr) * raw['v'], axis=-1)
    return (mean * raw['y_std'] + raw['y_mean'])[:, None]


# ----------------------------------- main -----------------------------------

if __name__ == "__main__":
    key = jax.random.PRNGKey(0)
    k_params, k_x = jax.random.split(key)
    params, raw = init_params(k_params)

    # encoder input: (batch=2, seq=8, input_dim=6), batch_first like the PyTorch module
    x = jax.random.normal(k_x, (B, T, D_IN), jnp.float32)

    forward = jax.jit(residual_model_svgp_forward)
    out = jax.block_until_ready(forward(x, params))          # (2, 1)

    # correctness: tight check vs a reference with the same MXU precision as the kernel,
    # loose check vs the full-f32 reference (bounds the bf16-at-MXU drift)
    ref_mxu = reference_forward(x, raw, mxu_dtype=jnp.bfloat16)
    ref_f32 = reference_forward(x, raw, mxu_dtype=jnp.float32)

    assert out.shape == (B, 1)
    assert bool(jnp.all(jnp.isfinite(out)))
    assert bool(jnp.allclose(out, ref_mxu, rtol=2e-3, atol=5e-3)), (out, ref_mxu)
    assert bool(jnp.allclose(out, ref_f32, rtol=5e-2, atol=1.5e-1)), (out, ref_f32)
    print("KERNEL_OK")
</pallas_src>

<mosaic_0001>
module attributes {stable_mosaic.version = 11 : i64} {
  func.func @fused_forward_kernel(%arg0: memref<64x8xf32, #tpu.memory_space<vmem>>, %arg1: memref<80x192xf32, #tpu.memory_space<vmem>>, %arg2: memref<40x16xf32, #tpu.memory_space<vmem>>, %arg3: memref<8x128xf32, #tpu.memory_space<vmem>>) attributes {dimension_semantics = [], scalar_prefetch = 0 : i64, scratch_operands = 0 : i64, tpu.core_type = #tpu.core_type<tc>} {
    %c0 = arith.constant 0 : index
    %c0_0 = arith.constant 0 : index
    %0 = vector.load %arg1[%c0, %c0_0] : memref<80x192xf32, #tpu.memory_space<vmem>>, vector<8x96xf32>
    %c8 = arith.constant 8 : index
    %c0_1 = arith.constant 0 : index
    %1 = vector.load %arg1[%c8, %c0_1] : memref<80x192xf32, #tpu.memory_space<vmem>>, vector<32x192xf32>
    %2 = arith.truncf %1 : vector<32x192xf32> to vector<32x192xbf16>
    %c40 = arith.constant 40 : index
    %c0_2 = arith.constant 0 : index
    %3 = vector.load %arg1[%c40, %c0_2] : memref<80x192xf32, #tpu.memory_space<vmem>>, vector<32x96xf32>
    %4 = arith.truncf %3 : vector<32x96xf32> to vector<32x96xbf16>
    %c72 = arith.constant 72 : index
    %c0_3 = arith.constant 0 : index
    %5 = vector.load %arg1[%c72, %c0_3] : memref<80x192xf32, #tpu.memory_space<vmem>>, vector<8x192xf32>
    %6 = vector.extract_strided_slice %5 {offsets = [0, 0], sizes = [1, 192], strides = [1, 1]} : vector<8x192xf32> to vector<1x192xf32>
    %7 = vector.extract_strided_slice %5 {offsets = [1, 0], sizes = [1, 96], strides = [1, 1]} : vector<8x192xf32> to vector<1x96xf32>
    %8 = vector.extract_strided_slice %5 {offsets = [2, 0], sizes = [1, 32], strides = [1, 1]} : vector<8x192xf32> to vector<1x32xf32>
    %9 = vector.extract_strided_slice %5 {offsets = [2, 32], sizes = [1, 32], strides = [1, 1]} : vector<8x192xf32> to vector<1x32xf32>
    %c0_4 = arith.constant 0 : index
    %c0_5 = arith.constant 0 : index
    %10 = vector.load %arg0[%c0_4, %c0_5] : memref<64x8xf32, #tpu.memory_space<vmem>>, vector<64x8xf32>
    %cst = arith.constant dense<0.000000e+00> : vector<64x96xf32>
    %11 = tpu.matmul %10, %0, %cst {dimension_numbers = #tpu.dot_dimension_numbers<[1], [0], [0], [1], [0, 0, 1, 1], [], []>} : vector<64x8xf32>, vector<8x96xf32>, vector<64x96xf32> -> vector<64x96xf32>
    %cst_6 = arith.constant 0.000000e+00 : f32
    %12 = vector.broadcast %cst_6 : f32 to vector<8x32xf32>
    %cst_7 = arith.constant 0.000000e+00 : f32
    %13 = vector.broadcast %cst_7 : f32 to vector<8x32xf32>
    %cst_8 = arith.constant 0.000000e+00 : f32
    %14 = vector.broadcast %cst_8 : f32 to vector<8x64xf32>
    %15 = vector.extract_strided_slice %6 {offsets = [0, 160], sizes = [1, 32], strides = [1, 1]} : vector<1x192xf32> to vector<1x32xf32>
    %16 = vector.shape_cast %15 : vector<1x32xf32> to vector<1x32xf32>
    %17 = vector.broadcast %16 : vector<1x32xf32> to vector<8x32xf32>
    %18 = vector.extract_strided_slice %11 {offsets = [0, 0], sizes = [8, 96], strides = [1, 1]} : vector<64x96xf32> to vector<8x96xf32>
    %19 = vector.extract_strided_slice %18 {offsets = [0, 0], sizes = [8, 64], strides = [1, 1]} : vector<8x96xf32> to vector<8x64xf32>
    %20 = arith.addf %19, %14 : vector<8x64xf32>
    %cst_9 = arith.constant 0.000000e+00 : f32
    %21 = vector.broadcast %cst_9 : f32 to vector<8x64xf32>
    %22 = arith.subf %21, %20 : vector<8x64xf32>
    %23 = math.exp %22 : vector<8x64xf32>
    %cst_10 = arith.constant 1.000000e+00 : f32
    %24 = vector.broadcast %cst_10 : f32 to vector<8x64xf32>
    %25 = arith.addf %24, %23 : vector<8x64xf32>
    %cst_11 = arith.constant 1.000000e+00 : f32
    %26 = vector.broadcast %cst_11 : f32 to vector<8x64xf32>
    %27 = arith.divf %26, %25 : vector<8x64xf32>
    %28 = vector.extract_strided_slice %18 {offsets = [0, 64], sizes = [8, 32], strides = [1, 1]} : vector<8x96xf32> to vector<8x32xf32>
    %29 = vector.extract_strided_slice %27 {offsets = [0, 0], sizes = [8, 32], strides = [1, 1]} : vector<8x64xf32> to vector<8x32xf32>
    %30 = arith.mulf %29, %17 : vector<8x32xf32>
    %31 = arith.addf %28, %30 : vector<8x32xf32>
    %32 = math.tanh %31 : vector<8x32xf32>
    %33 = vector.extract_strided_slice %27 {offsets = [0, 32], sizes = [8, 32], strides = [1, 1]} : vector<8x64xf32> to vector<8x32xf32>
    %cst_12 = arith.constant 1.000000e+00 : f32
    %34 = vector.broadcast %cst_12 : f32 to vector<8x32xf32>
    %35 = arith.subf %34, %33 : vector<8x32xf32>
    %36 = arith.mulf %35, %32 : vector<8x32xf32>
    %37 = arith.mulf %33, %12 : vector<8x32xf32>
    %38 = arith.addf %36, %37 : vector<8x32xf32>
    %39 = arith.truncf %38 : vector<8x32xf32> to vector<8x32xbf16>
    %cst_13 = arith.constant dense<0.000000e+00> : vector<8x192xf32>
    %40 = tpu.matmul %39, %2, %cst_13 {dimension_numbers = #tpu.dot_dimension_numbers<[1], [0], [0], [1], [0, 0, 1, 1], [], []>} : vector<8x32xbf16>, vector<32x192xbf16>, vector<8x192xf32> -> vector<8x192xf32>
    %41 = vector.broadcast %6 : vector<1x192xf32> to vector<8x192xf32>
    %42 = arith.addf %40, %41 : vector<8x192xf32>
    %43 = vector.extract_strided_slice %42 {offsets = [0, 0], sizes = [8, 64], strides = [1, 1]} : vector<8x192xf32> to vector<8x64xf32>
    %44 = vector.extract_strided_slice %42 {offsets = [0, 64], sizes = [8, 64], strides = [1, 1]} : vector<8x192xf32> to vector<8x64xf32>
    %45 = vector.extract_strided_slice %42 {offsets = [0, 128], sizes = [8, 32], strides = [1, 1]} : vector<8x192xf32> to vector<8x32xf32>
    %46 = vector.extract_strided_slice %42 {offsets = [0, 160], sizes = [8, 32], strides = [1, 1]} : vector<8x192xf32> to vector<8x32xf32>
    %47 = arith.truncf %13 : vector<8x32xf32> to vector<8x32xbf16>
    %cst_14 = arith.constant dense<0.000000e+00> : vector<8x96xf32>
    %48 = tpu.matmul %47, %4, %cst_14 {dimension_numbers = #tpu.dot_dimension_numbers<[1], [0], [0], [1], [0, 0, 1, 1], [], []>} : vector<8x32xbf16>, vector<32x96xbf16>, vector<8x96xf32> -> vector<8x96xf32>
    %49 = vector.broadcast %7 : vector<1x96xf32> to vector<8x96xf32>
    %50 = arith.addf %48, %49 : vector<8x96xf32>
    %51 = vector.extract_strided_slice %50 {offsets = [0, 0], sizes = [8, 64], strides = [1, 1]} : vector<8x96xf32> to vector<8x64xf32>
    %52 = arith.addf %43, %51 : vector<8x64xf32>
    %cst_15 = arith.constant 0.000000e+00 : f32
    %53 = vector.broadcast %cst_15 : f32 to vector<8x64xf32>
    %54 = arith.subf %53, %52 : vector<8x64xf32>
    %55 = math.exp %54 : vector<8x64xf32>
    %cst_16 = arith.constant 1.000000e+00 : f32
    %56 = vector.broadcast %cst_16 : f32 to vector<8x64xf32>
    %57 = arith.addf %56, %55 : vector<8x64xf32>
    %cst_17 = arith.constant 1.000000e+00 : f32
    %58 = vector.broadcast %cst_17 : f32 to vector<8x64xf32>
    %59 = arith.divf %58, %57 : vector<8x64xf32>
    %60 = vector.extract_strided_slice %59 {offsets = [0, 0], sizes = [8, 32], strides = [1, 1]} : vector<8x64xf32> to vector<8x32xf32>
    %61 = vector.extract_strided_slice %50 {offsets = [0, 64], sizes = [8, 32], strides = [1, 1]} : vector<8x96xf32> to vector<8x32xf32>
    %62 = arith.mulf %60, %61 : vector<8x32xf32>
    %63 = arith.addf %45, %62 : vector<8x32xf32>
    %64 = math.tanh %63 : vector<8x32xf32>
    %65 = vector.extract_strided_slice %59 {offsets = [0, 32], sizes = [8, 32], strides = [1, 1]} : vector<8x64xf32> to vector<8x32xf32>
    %cst_18 = arith.constant 1.000000e+00 : f32
    %66 = vector.broadcast %cst_18 : f32 to vector<8x32xf32>
    %67 = arith.subf %66, %65 : vector<8x32xf32>
    %68 = arith.mulf %67, %64 : vector<8x32xf32>
    %69 = arith.mulf %65, %13 : vector<8x32xf32>
    %70 = arith.addf %68, %69 : vector<8x32xf32>
    %71 = vector.extract_strided_slice %11 {offsets = [8, 0], sizes = [8, 96], strides = [1, 1]} : vector<64x96xf32> to vector<8x96xf32>
    %72 = vector.extract_strided_slice %71 {offsets = [0, 0], sizes = [8, 64], strides = [1, 1]} : vector<8x96xf32> to vector<8x64xf32>
    %73 = arith.addf %72, %44 : vector<8x64xf32>
    %cst_19 = arith.constant 0.000000e+00 : f32
    %74 = vector.broadcast %cst_19 : f32 to vector<8x64xf32>
    %75 = arith.subf %74, %73 : vector<8x64xf32>
    %76 = math.exp %75 : vector<8x64xf32>
    %cst_20 = arith.constant 1.000000e+00 : f32
    %77 = vector.broadcast %cst_20 : f32 to vector<8x64xf32>
    %78 = arith.addf %77, %76 : vector<8x64xf32>
    %cst_21 = arith.constant 1.000000e+00 : f32
    %79 = vector.broadcast %cst_21 : f32 to vector<8x64xf32>
    %80 = arith.divf %79, %78 : vector<8x64xf32>
    %81 = vector.extract_strided_slice %71 {offsets = [0, 64], sizes = [8, 32], strides = [1, 1]} : vector<8x96xf32> to vector<8x32xf32>
    %82 = vector.extract_strided_slice %80 {offsets = [0, 0], sizes = [8, 32], strides = [1, 1]} : vector<8x64xf32> to vector<8x32xf32>
    %83 = arith.mulf %82, %46 : vector<8x32xf32>
    %84 = arith.addf %81, %83 : vector<8x32xf32>
    %85 = math.tanh %84 : vector<8x32xf32>
    %86 = vector.extract_strided_slice %80 {offsets = [0, 32], sizes = [8, 32], strides = [1, 1]} : vector<8x64xf32> to vector<8x32xf32>
    %cst_22 = arith.constant 1.000000e+00 : f32
    %87 = vector.broadcast %cst_22 : f32 to vector<8x32xf32>
    %88 = arith.subf %87, %86 : vector<8x32xf32>
    %89 = arith.mulf %88, %85 : vector<8x32xf32>
    %90 = arith.mulf %86, %38 : vector<8x32xf32>
    %91 = arith.addf %89, %90 : vector<8x32xf32>
    %92 = arith.truncf %91 : vector<8x32xf32> to vector<8x32xbf16>
    %cst_23 = arith.constant dense<0.000000e+00> : vector<8x192xf32>
    %93 = tpu.matmul %92, %2, %cst_23 {dimension_numbers = #tpu.dot_dimension_numbers<[1], [0], [0], [1], [0, 0, 1, 1], [], []>} : vector<8x32xbf16>, vector<32x192xbf16>, vector<8x192xf32> -> vector<8x192xf32>
    %94 = vector.broadcast %6 : vector<1x192xf32> to vector<8x192xf32>
    %95 = arith.addf %93, %94 : vector<8x192xf32>
    %96 = vector.extract_strided_slice %95 {offsets = [0, 0], sizes = [8, 64], strides = [1, 1]} : vector<8x192xf32> to vector<8x64xf32>
    %97 = vector.extract_strided_slice %95 {offsets = [0, 64], sizes = [8, 64], strides = [1, 1]} : vector<8x192xf32> to vector<8x64xf32>
    %98 = vector.extract_strided_slice %95 {offsets = [0, 128], sizes = [8, 32], strides = [1, 1]} : vector<8x192xf32> to vector<8x32xf32>
    %99 = vector.extract_strided_slice %95 {offsets = [0, 160], sizes = [8, 32], strides = [1, 1]} : vector<8x192xf32> to vector<8x32xf32>
    %100 = arith.truncf %70 : vector<8x32xf32> to vector<8x32xbf16>
    %cst_24 = arith.constant dense<0.000000e+00> : vector<8x96xf32>
    %101 = tpu.matmul %100, %4, %cst_24 {dimension_numbers = #tpu.dot_dimension_numbers<[1], [0], [0], [1], [0, 0, 1, 1], [], []>} : vector<8x32xbf16>, vector<32x96xbf16>, vector<8x96xf32> -> vector<8x96xf32>
    %102 = vector.broadcast %7 : vector<1x96xf32> to vector<8x96xf32>
    %103 = arith.addf %101, %102 : vector<8x96xf32>
    %104 = vector.extract_strided_slice %103 {offsets = [0, 0], sizes = [8, 64], strides = [1, 1]} : vector<8x96xf32> to vector<8x64xf32>
    %105 = arith.addf %96, %104 : vector<8x64xf32>
    %cst_25 = arith.constant 0.000000e+00 : f32
    %106 = vector.broadcast %cst_25 : f32 to vector<8x64xf32>
    %107 = arith.subf %106, %105 : vector<8x64xf32>
    %108 = math.exp %107 : vector<8x64xf32>
    %cst_26 = arith.constant 1.000000e+00 : f32
    %109 = vector.broadcast %cst_26 : f32 to vector<8x64xf32>
    %110 = arith.addf %109, %108 : vector<8x64xf32>
    %cst_27 = arith.constant 1.000000e+00 : f32
    %111 = vector.broadcast %cst_27 : f32 to vector<8x64xf32>
    %112 = arith.divf %111, %110 : vector<8x64xf32>
    %113 = vector.extract_strided_slice %112 {offsets = [0, 0], sizes = [8, 32], strides = [1, 1]} : vector<8x64xf32> to vector<8x32xf32>
    %114 = vector.extract_strided_slice %103 {offsets = [0, 64], sizes = [8, 32], strides = [1, 1]} : vector<8x96xf32> to vector<8x32xf32>
    %115 = arith.mulf %113, %114 : vector<8x32xf32>
    %116 = arith.addf %98, %115 : vector<8x32xf32>
    %117 = math.tanh %116 : vector<8x32xf32>
    %118 = vector.extract_strided_slice %112 {offsets = [0, 32], sizes = [8, 32], strides = [1, 1]} : vector<8x64xf32> to vector<8x32xf32>
    %cst_28 = arith.constant 1.000000e+00 : f32
    %119 = vector.broadcast %cst_28 : f32 to vector<8x32xf32>
    %120 = arith.subf %119, %118 : vector<8x32xf32>
    %121 = arith.mulf %120, %117 : vector<8x32xf32>
    %122 = arith.mulf %118, %70 : vector<8x32xf32>
    %123 = arith.addf %121, %122 : vector<8x32xf32>
    %124 = vector.extract_strided_slice %11 {offsets = [16, 0], sizes = [8, 96], strides = [1, 1]} : vector<64x96xf32> to vector<8x96xf32>
    %125 = vector.extract_strided_slice %124 {offsets = [0, 0], sizes = [8, 64], strides = [1, 1]} : vector<8x96xf32> to vector<8x64xf32>
    %126 = arith.addf %125, %97 : vector<8x64xf32>
    %cst_29 = arith.constant 0.000000e+00 : f32
    %127 = vector.broadcast %cst_29 : f32 to vector<8x64xf32>
    %128 = arith.subf %127, %126 : vector<8x64xf32>
    %129 = math.exp %128 : vector<8x64xf32>
    %cst_30 = arith.constant 1.000000e+00 : f32
    %130 = vector.broadcast %cst_30 : f32 to vector<8x64xf32>
    %131 = arith.addf %130, %129 : vector<8x64xf32>
    %cst_31 = arith.constant 1.000000e+00 : f32
    %132 = vector.broadcast %cst_31 : f32 to vector<8x64xf32>
    %133 = arith.divf %132, %131 : vector<8x64xf32>
    %134 = vector.extract_strided_slice %124 {offsets = [0, 64], sizes = [8, 32], strides = [1, 1]} : vector<8x96xf32> to vector<8x32xf32>
    %135 = vector.extract_strided_slice %133 {offsets = [0, 0], sizes = [8, 32], strides = [1, 1]} : vector<8x64xf32> to vector<8x32xf32>
    %136 = arith.mulf %135, %99 : vector<8x32xf32>
    %137 = arith.addf %134, %136 : vector<8x32xf32>
    %138 = math.tanh %137 : vector<8x32xf32>
    %139 = vector.extract_strided_slice %133 {offsets = [0, 32], sizes = [8, 32], strides = [1, 1]} : vector<8x64xf32> to vector<8x32xf32>
    %cst_32 = arith.constant 1.000000e+00 : f32
    %140 = vector.broadcast %cst_32 : f32 to vector<8x32xf32>
    %141 = arith.subf %140, %139 : vector<8x32xf32>
    %142 = arith.mulf %141, %138 : vector<8x32xf32>
    %143 = arith.mulf %139, %91 : vector<8x32xf32>
    %144 = arith.addf %142, %143 : vector<8x32xf32>
    %145 = arith.truncf %144 : vector<8x32xf32> to vector<8x32xbf16>
    %cst_33 = arith.constant dense<0.000000e+00> : vector<8x192xf32>
    %146 = tpu.matmul %145, %2, %cst_33 {dimension_numbers = #tpu.dot_dimension_numbers<[1], [0], [0], [1], [0, 0, 1, 1], [], []>} : vector<8x32xbf16>, vector<32x192xbf16>, vector<8x192xf32> -> vector<8x192xf32>
    %147 = vector.broadcast %6 : vector<1x192xf32> to vector<8x192xf32>
    %148 = arith.addf %146, %147 : vector<8x192xf32>
    %149 = vector.extract_strided_slice %148 {offsets = [0, 0], sizes = [8, 64], strides = [1, 1]} : vector<8x192xf32> to vector<8x64xf32>
    %150 = vector.extract_strided_slice %148 {offsets = [0, 64], sizes = [8, 64], strides = [1, 1]} : vector<8x192xf32> to vector<8x64xf32>
    %151 = vector.extract_strided_slice %148 {offsets = [0, 128], sizes = [8, 32], strides = [1, 1]} : vector<8x192xf32> to vector<8x32xf32>
    %152 = vector.extract_strided_slice %148 {offsets = [0, 160], sizes = [8, 32], strides = [1, 1]} : vector<8x192xf32> to vector<8x32xf32>
    %153 = arith.truncf %123 : vector<8x32xf32> to vector<8x32xbf16>
    %cst_34 = arith.constant dense<0.000000e+00> : vector<8x96xf32>
    %154 = tpu.matmul %153, %4, %cst_34 {dimension_numbers = #tpu.dot_dimension_numbers<[1], [0], [0], [1], [0, 0, 1, 1], [], []>} : vector<8x32xbf16>, vector<32x96xbf16>, vector<8x96xf32> -> vector<8x96xf32>
    %155 = vector.broadcast %7 : vector<1x96xf32> to vector<8x96xf32>
    %156 = arith.addf %154, %155 : vector<8x96xf32>
    %157 = vector.extract_strided_slice %156 {offsets = [0, 0], sizes = [8, 64], strides = [1, 1]} : vector<8x96xf32> to vector<8x64xf32>
    %158 = arith.addf %149, %157 : vector<8x64xf32>
    %cst_35 = arith.constant 0.000000e+00 : f32
    %159 = vector.broadcast %cst_35 : f32 to vector<8x64xf32>
    %160 = arith.subf %159, %158 : vector<8x64xf32>
    %161 = math.exp %160 : vector<8x64xf32>
    %cst_36 = arith.constant 1.000000e+00 : f32
    %162 = vector.broadcast %cst_36 : f32 to vector<8x64xf32>
    %163 = arith.addf %162, %161 : vector<8x64xf32>
    %cst_37 = arith.constant 1.000000e+00 : f32
    %164 = vector.broadcast %cst_37 : f32 to vector<8x64xf32>
    %165 = arith.divf %164, %163 : vector<8x64xf32>
    %166 = vector.extract_strided_slice %165 {offsets = [0, 0], sizes = [8, 32], strides = [1, 1]} : vector<8x64xf32> to vector<8x32xf32>
    %167 = vector.extract_strided_slice %156 {offsets = [0, 64], sizes = [8, 32], strides = [1, 1]} : vector<8x96xf32> to vector<8x32xf32>
    %168 = arith.mulf %166, %167 : vector<8x32xf32>
    %169 = arith.addf %151, %168 : vector<8x32xf32>
    %170 = math.tanh %169 : vector<8x32xf32>
    %171 = vector.extract_strided_slice %165 {offsets = [0, 32], sizes = [8, 32], strides = [1, 1]} : vector<8x64xf32> to vector<8x32xf32>
    %cst_38 = arith.constant 1.000000e+00 : f32
    %172 = vector.broadcast %cst_38 : f32 to vector<8x32xf32>
    %173 = arith.subf %172, %171 : vector<8x32xf32>
    %174 = arith.mulf %173, %170 : vector<8x32xf32>
    %175 = arith.mulf %171, %123 : vector<8x32xf32>
    %176 = arith.addf %174, %175 : vector<8x32xf32>
    %177 = vector.extract_strided_slice %11 {offsets = [24, 0], sizes = [8, 96], strides = [1, 1]} : vector<64x96xf32> to vector<8x96xf32>
    %178 = vector.extract_strided_slice %177 {offsets = [0, 0], sizes = [8, 64], strides = [1, 1]} : vector<8x96xf32> to vector<8x64xf32>
    %179 = arith.addf %178, %150 : vector<8x64xf32>
    %cst_39 = arith.constant 0.000000e+00 : f32
    %180 = vector.broadcast %cst_39 : f32 to vector<8x64xf32>
    %181 = arith.subf %180, %179 : vector<8x64xf32>
    %182 = math.exp %181 : vector<8x64xf32>
    %cst_40 = arith.constant 1.000000e+00 : f32
    %183 = vector.broadcast %cst_40 : f32 to vector<8x64xf32>
    %184 = arith.addf %183, %182 : vector<8x64xf32>
    %cst_41 = arith.constant 1.000000e+00 : f32
    %185 = vector.broadcast %cst_41 : f32 to vector<8x64xf32>
    %186 = arith.divf %185, %184 : vector<8x64xf32>
    %187 = vector.extract_strided_slice %177 {offsets = [0, 64], sizes = [8, 32], strides = [1, 1]} : vector<8x96xf32> to vector<8x32xf32>
    %188 = vector.extract_strided_slice %186 {offsets = [0, 0], sizes = [8, 32], strides = [1, 1]} : vector<8x64xf32> to vector<8x32xf32>
    %189 = arith.mulf %188, %152 : vector<8x32xf32>
    %190 = arith.addf %187, %189 : vector<8x32xf32>
    %191 = math.tanh %190 : vector<8x32xf32>
    %192 = vector.extract_strided_slice %186 {offsets = [0, 32], sizes = [8, 32], strides = [1, 1]} : vector<8x64xf32> to vector<8x32xf32>
    %cst_42 = arith.constant 1.000000e+00 : f32
    %193 = vector.broadcast %cst_42 : f32 to vector<8x32xf32>
    %194 = arith.subf %193, %192 : vector<8x32xf32>
    %195 = arith.mulf %194, %191 : vector<8x32xf32>
    %196 = arith.mulf %192, %144 : vector<8x32xf32>
    %197 = arith.addf %195, %196 : vector<8x32xf32>
    %198 = arith.truncf %197 : vector<8x32xf32> to vector<8x32xbf16>
    %cst_43 = arith.constant dense<0.000000e+00> : vector<8x192xf32>
    %199 = tpu.matmul %198, %2, %cst_43 {dimension_numbers = #tpu.dot_dimension_numbers<[1], [0], [0], [1], [0, 0, 1, 1], [], []>} : vector<8x32xbf16>, vector<32x192xbf16>, vector<8x192xf32> -> vector<8x192xf32>
    %200 = vector.broadcast %6 : vector<1x192xf32> to vector<8x192xf32>
    %201 = arith.addf %199, %200 : vector<8x192xf32>
    %202 = vector.extract_strided_slice %201 {offsets = [0, 0], sizes = [8, 64], strides = [1, 1]} : vector<8x192xf32> to vector<8x64xf32>
    %203 = vector.extract_strided_slice %201 {offsets = [0, 64], sizes = [8, 64], strides = [1, 1]} : vector<8x192xf32> to vector<8x64xf32>
    %204 = vector.extract_strided_slice %201 {offsets = [0, 128], sizes = [8, 32], strides = [1, 1]} : vector<8x192xf32> to vector<8x32xf32>
    %205 = vector.extract_strided_slice %201 {offsets = [0, 160], sizes = [8, 32], strides = [1, 1]} : vector<8x192xf32> to vector<8x32xf32>
    %206 = arith.truncf %176 : vector<8x32xf32> to vector<8x32xbf16>
    %cst_44 = arith.constant dense<0.000000e+00> : vector<8x96xf32>
    %207 = tpu.matmul %206, %4, %cst_44 {dimension_numbers = #tpu.dot_dimension_numbers<[1], [0], [0], [1], [0, 0, 1, 1], [], []>} : vector<8x32xbf16>, vector<32x96xbf16>, vector<8x96xf32> -> vector<8x96xf32>
    %208 = vector.broadcast %7 : vector<1x96xf32> to vector<8x96xf32>
    %209 = arith.addf %207, %208 : vector<8x96xf32>
    %210 = vector.extract_strided_slice %209 {offsets = [0, 0], sizes = [8, 64], strides = [1, 1]} : vector<8x96xf32> to vector<8x64xf32>
    %211 = arith.addf %202, %210 : vector<8x64xf32>
    %cst_45 = arith.constant 0.000000e+00 : f32
    %212 = vector.broadcast %cst_45 : f32 to vector<8x64xf32>
    %213 = arith.subf %212, %211 : vector<8x64xf32>
    %214 = math.exp %213 : vector<8x64xf32>
    %cst_46 = arith.constant 1.000000e+00 : f32
    %215 = vector.broadcast %cst_46 : f32 to vector<8x64xf32>
    %216 = arith.addf %215, %214 : vector<8x64xf32>
    %cst_47 = arith.constant 1.000000e+00 : f32
    %217 = vector.broadcast %cst_47 : f32 to vector<8x64xf32>
    %218 = arith.divf %217, %216 : vector<8x64xf32>
    %219 = vector.extract_strided_slice %218 {offsets = [0, 0], sizes = [8, 32], strides = [1, 1]} : vector<8x64xf32> to vector<8x32xf32>
    %220 = vector.extract_strided_slice %209 {offsets = [0, 64], sizes = [8, 32], strides = [1, 1]} : vector<8x96xf32> to vector<8x32xf32>
    %221 = arith.mulf %219, %220 : vector<8x32xf32>
    %222 = arith.addf %204, %221 : vector<8x32xf32>
    %223 = math.tanh %222 : vector<8x32xf32>
    %224 = vector.extract_strided_slice %218 {offsets = [0, 32], sizes = [8, 32], strides = [1, 1]} : vector<8x64xf32> to vector<8x32xf32>
    %cst_48 = arith.constant 1.000000e+00 : f32
    %225 = vector.broadcast %cst_48 : f32 to vector<8x32xf32>
    %226 = arith.subf %225, %224 : vector<8x32xf32>
    %227 = arith.mulf %226, %223 : vector<8x32xf32>
    %228 = arith.mulf %224, %176 : vector<8x32xf32>
    %229 = arith.addf %227, %228 : vector<8x32xf32>
    %230 = vector.extract_strided_slice %11 {offsets = [32, 0], sizes = [8, 96], strides = [1, 1]} : vector<64x96xf32> to vector<8x96xf32>
    %231 = vector.extract_strided_slice %230 {offsets = [0, 0], sizes = [8, 64], strides = [1, 1]} : vector<8x96xf32> to vector<8x64xf32>
    %232 = arith.addf %231, %203 : vector<8x64xf32>
    %cst_49 = arith.constant 0.000000e+00 : f32
    %233 = vector.broadcast %cst_49 : f32 to vector<8x64xf32>
    %234 = arith.subf %233, %232 : vector<8x64xf32>
    %235 = math.exp %234 : vector<8x64xf32>
    %cst_50 = arith.constant 1.000000e+00 : f32
    %236 = vector.broadcast %cst_50 : f32 to vector<8x64xf32>
    %237 = arith.addf %236, %235 : vector<8x64xf32>
    %cst_51 = arith.constant 1.000000e+00 : f32
    %238 = vector.broadcast %cst_51 : f32 to vector<8x64xf32>
    %239 = arith.divf %238, %237 : vector<8x64xf32>
    %240 = vector.extract_strided_slice %230 {offsets = [0, 64], sizes = [8, 32], strides = [1, 1]} : vector<8x96xf32> to vector<8x32xf32>
    %241 = vector.extract_strided_slice %239 {offsets = [0, 0], sizes = [8, 32], strides = [1, 1]} : vector<8x64xf32> to vector<8x32xf32>
    %242 = arith.mulf %241, %205 : vector<8x32xf32>
    %243 = arith.addf %240, %242 : vector<8x32xf32>
    %244 = math.tanh %243 : vector<8x32xf32>
    %245 = vector.extract_strided_slice %239 {offsets = [0, 32], sizes = [8, 32], strides = [1, 1]} : vector<8x64xf32> to vector<8x32xf32>
    %cst_52 = arith.constant 1.000000e+00 : f32
    %246 = vector.broadcast %cst_52 : f32 to vector<8x32xf32>
    %247 = arith.subf %246, %245 : vector<8x32xf32>
    %248 = arith.mulf %247, %244 : vector<8x32xf32>
    %249 = arith.mulf %245, %197 : vector<8x32xf32>
    %250 = arith.addf %248, %249 : vector<8x32xf32>
    %251 = arith.truncf %250 : vector<8x32xf32> to vector<8x32xbf16>
    %cst_53 = arith.constant dense<0.000000e+00> : vector<8x192xf32>
    %252 = tpu.matmul %251, %2, %cst_53 {dimension_numbers = #tpu.dot_dimension_numbers<[1], [0], [0], [1], [0, 0, 1, 1], [], []>} : vector<8x32xbf16>, vector<32x192xbf16>, vector<8x192xf32> -> vector<8x192xf32>
    %253 = vector.broadcast %6 : vector<1x192xf32> to vector<8x192xf32>
    %254 = arith.addf %252, %253 : vector<8x192xf32>
    %255 = vector.extract_strided_slice %254 {offsets = [0, 0], sizes = [8, 64], strides = [1, 1]} : vector<8x192xf32> to vector<8x64xf32>
    %256 = vector.extract_strided_slice %254 {offsets = [0, 64], sizes = [8, 64], strides = [1, 1]} : vector<8x192xf32> to vector<8x64xf32>
    %257 = vector.extract_strided_slice %254 {offsets = [0, 128], sizes = [8, 32], strides = [1, 1]} : vector<8x192xf32> to vector<8x32xf32>
    %258 = vector.extract_strided_slice %254 {offsets = [0, 160], sizes = [8, 32], strides = [1, 1]} : vector<8x192xf32> to vector<8x32xf32>
    %259 = arith.truncf %229 : vector<8x32xf32> to vector<8x32xbf16>
    %cst_54 = arith.constant dense<0.000000e+00> : vector<8x96xf32>
    %260 = tpu.matmul %259, %4, %cst_54 {dimension_numbers = #tpu.dot_dimension_numbers<[1], [0], [0], [1], [0, 0, 1, 1], [], []>} : vector<8x32xbf16>, vector<32x96xbf16>, vector<8x96xf32> -> vector<8x96xf32>
    %261 = vector.broadcast %7 : vector<1x96xf32> to vector<8x96xf32>
    %262 = arith.addf %260, %261 : vector<8x96xf32>
    %263 = vector.extract_strided_slice %262 {offsets = [0, 0], sizes = [8, 64], strides = [1, 1]} : vector<8x96xf32> to vector<8x64xf32>
    %264 = arith.addf %255, %263 : vector<8x64xf32>
    %cst_55 = arith.constant 0.000000e+00 : f32
    %265 = vector.broadcast %cst_55 : f32 to vector<8x64xf32>
    %266 = arith.subf %265, %264 : vector<8x64xf32>
    %267 = math.exp %266 : vector<8x64xf32>
    %cst_56 = arith.constant 1.000000e+00 : f32
    %268 = vector.broadcast %cst_56 : f32 to vector<8x64xf32>
    %269 = arith.addf %268, %267 : vector<8x64xf32>
    %cst_57 = arith.constant 1.000000e+00 : f32
    %270 = vector.broadcast %cst_57 : f32 to vector<8x64xf32>
    %271 = arith.divf %270, %269 : vector<8x64xf32>
    %272 = vector.extract_strided_slice %271 {offsets = [0, 0], sizes = [8, 32], strides = [1, 1]} : vector<8x64xf32> to vector<8x32xf32>
    %273 = vector.extract_strided_slice %262 {offsets = [0, 64], sizes = [8, 32], strides = [1, 1]} : vector<8x96xf32> to vector<8x32xf32>
    %274 = arith.mulf %272, %273 : vector<8x32xf32>
    %275 = arith.addf %257, %274 : vector<8x32xf32>
    %276 = math.tanh %275 : vector<8x32xf32>
    %277 = vector.extract_strided_slice %271 {offsets = [0, 32], sizes = [8, 32], strides = [1, 1]} : vector<8x64xf32> to vector<8x32xf32>
    %cst_58 = arith.constant 1.000000e+00 : f32
    %278 = vector.broadcast %cst_58 : f32 to vector<8x32xf32>
    %279 = arith.subf %278, %277 : vector<8x32xf32>
    %280 = arith.mulf %279, %276 : vector<8x32xf32>
    %281 = arith.mulf %277, %229 : vector<8x32xf32>
    %282 = arith.addf %280, %281 : vector<8x32xf32>
    %283 = vector.extract_strided_slice %11 {offsets = [40, 0], sizes = [8, 96], strides = [1, 1]} : vector<64x96xf32> to vector<8x96xf32>
    %284 = vector.extract_strided_slice %283 {offsets = [0, 0], sizes = [8, 64], strides = [1, 1]} : vector<8x96xf32> to vector<8x64xf32>
    %285 = arith.addf %284, %256 : vector<8x64xf32>
    %cst_59 = arith.constant 0.000000e+00 : f32
    %286 = vector.broadcast %cst_59 : f32 to vector<8x64xf32>
    %287 = arith.subf %286, %285 : vector<8x64xf32>
    %288 = math.exp %287 : vector<8x64xf32>
    %cst_60 = arith.constant 1.000000e+00 : f32
    %289 = vector.broadcast %cst_60 : f32 to vector<8x64xf32>
    %290 = arith.addf %289, %288 : vector<8x64xf32>
    %cst_61 = arith.constant 1.000000e+00 : f32
    %291 = vector.broadcast %cst_61 : f32 to vector<8x64xf32>
    %292 = arith.divf %291, %290 : vector<8x64xf32>
    %293 = vector.extract_strided_slice %283 {offsets = [0, 64], sizes = [8, 32], strides = [1, 1]} : vector<8x96xf32> to vector<8x32xf32>
    %294 = vector.extract_strided_slice %292 {offsets = [0, 0], sizes = [8, 32], strides = [1, 1]} : vector<8x64xf32> to vector<8x32xf32>
    %295 = arith.mulf %294, %258 : vector<8x32xf32>
    %296 = arith.addf %293, %295 : vector<8x32xf32>
    %297 = math.tanh %296 : vector<8x32xf32>
    %298 = vector.extract_strided_slice %292 {offsets = [0, 32], sizes = [8, 32], strides = [1, 1]} : vector<8x64xf32> to vector<8x32xf32>
    %cst_62 = arith.constant 1.000000e+00 : f32
    %299 = vector.broadcast %cst_62 : f32 to vector<8x32xf32>
    %300 = arith.subf %299, %298 : vector<8x32xf32>
    %301 = arith.mulf %300, %297 : vector<8x32xf32>
    %302 = arith.mulf %298, %250 : vector<8x32xf32>
    %303 = arith.addf %301, %302 : vector<8x32xf32>
    %304 = arith.truncf %303 : vector<8x32xf32> to vector<8x32xbf16>
    %cst_63 = arith.constant dense<0.000000e+00> : vector<8x192xf32>
    %305 = tpu.matmul %304, %2, %cst_63 {dimension_numbers = #tpu.dot_dimension_numbers<[1], [0], [0], [1], [0, 0, 1, 1], [], []>} : vector<8x32xbf16>, vector<32x192xbf16>, vector<8x192xf32> -> vector<8x192xf32>
    %306 = vector.broadcast %6 : vector<1x192xf32> to vector<8x192xf32>
    %307 = arith.addf %305, %306 : vector<8x192xf32>
    %308 = vector.extract_strided_slice %307 {offsets = [0, 0], sizes = [8, 64], strides = [1, 1]} : vector<8x192xf32> to vector<8x64xf32>
    %309 = vector.extract_strided_slice %307 {offsets = [0, 64], sizes = [8, 64], strides = [1, 1]} : vector<8x192xf32> to vector<8x64xf32>
    %310 = vector.extract_strided_slice %307 {offsets = [0, 128], sizes = [8, 32], strides = [1, 1]} : vector<8x192xf32> to vector<8x32xf32>
    %311 = vector.extract_strided_slice %307 {offsets = [0, 160], sizes = [8, 32], strides = [1, 1]} : vector<8x192xf32> to vector<8x32xf32>
    %312 = arith.truncf %282 : vector<8x32xf32> to vector<8x32xbf16>
    %cst_64 = arith.constant dense<0.000000e+00> : vector<8x96xf32>
    %313 = tpu.matmul %312, %4, %cst_64 {dimension_numbers = #tpu.dot_dimension_numbers<[1], [0], [0], [1], [0, 0, 1, 1], [], []>} : vector<8x32xbf16>, vector<32x96xbf16>, vector<8x96xf32> -> vector<8x96xf32>
    %314 = vector.broadcast %7 : vector<1x96xf32> to vector<8x96xf32>
    %315 = arith.addf %313, %314 : vector<8x96xf32>
    %316 = vector.extract_strided_slice %315 {offsets = [0, 0], sizes = [8, 64], strides = [1, 1]} : vector<8x96xf32> to vector<8x64xf32>
    %317 = arith.addf %308, %316 : vector<8x64xf32>
    %cst_65 = arith.constant 0.000000e+00 : f32
    %318 = vector.broadcast %cst_65 : f32 to vector<8x64xf32>
    %319 = arith.subf %318, %317 : vector<8x64xf32>
    %320 = math.exp %319 : vector<8x64xf32>
    %cst_66 = arith.constant 1.000000e+00 : f32
    %321 = vector.broadcast %cst_66 : f32 to vector<8x64xf32>
    %322 = arith.addf %321, %320 : vector<8x64xf32>
    %cst_67 = arith.constant 1.000000e+00 : f32
    %323 = vector.broadcast %cst_67 : f32 to vector<8x64xf32>
    %324 = arith.divf %323, %322 : vector<8x64xf32>
    %325 = vector.extract_strided_slice %324 {offsets = [0, 0], sizes = [8, 32], strides = [1, 1]} : vector<8x64xf32> to vector<8x32xf32>
    %326 = vector.extract_strided_slice %315 {offsets = [0, 64], sizes = [8, 32], strides = [1, 1]} : vector<8x96xf32> to vector<8x32xf32>
    %327 = arith.mulf %325, %326 : vector<8x32xf32>
    %328 = arith.addf %310, %327 : vector<8x32xf32>
    %329 = math.tanh %328 : vector<8x32xf32>
    %330 = vector.extract_strided_slice %324 {offsets = [0, 32], sizes = [8, 32], strides = [1, 1]} : vector<8x64xf32> to vector<8x32xf32>
    %cst_68 = arith.constant 1.000000e+00 : f32
    %331 = vector.broadcast %cst_68 : f32 to vector<8x32xf32>
    %332 = arith.subf %331, %330 : vector<8x32xf32>
    %333 = arith.mulf %332, %329 : vector<8x32xf32>
    %334 = arith.mulf %330, %282 : vector<8x32xf32>
    %335 = arith.addf %333, %334 : vector<8x32xf32>
    %336 = vector.extract_strided_slice %11 {offsets = [48, 0], sizes = [8, 96], strides = [1, 1]} : vector<64x96xf32> to vector<8x96xf32>
    %337 = vector.extract_strided_slice %336 {offsets = [0, 0], sizes = [8, 64], strides = [1, 1]} : vector<8x96xf32> to vector<8x64xf32>
    %338 = arith.addf %337, %309 : vector<8x64xf32>
    %cst_69 = arith.constant 0.000000e+00 : f32
    %339 = vector.broadcast %cst_69 : f32 to vector<8x64xf32>
    %340 = arith.subf %339, %338 : vector<8x64xf32>
    %341 = math.exp %340 : vector<8x64xf32>
    %cst_70 = arith.constant 1.000000e+00 : f32
    %342 = vector.broadcast %cst_70 : f32 to vector<8x64xf32>
    %343 = arith.addf %342, %341 : vector<8x64xf32>
    %cst_71 = arith.constant 1.000000e+00 : f32
    %344 = vector.broadcast %cst_71 : f32 to vector<8x64xf32>
    %345 = arith.divf %344, %343 : vector<8x64xf32>
    %346 = vector.extract_strided_slice %336 {offsets = [0, 64], sizes = [8, 32], strides = [1, 1]} : vector<8x96xf32> to vector<8x32xf32>
    %347 = vector.extract_strided_slice %345 {offsets = [0, 0], sizes = [8, 32], strides = [1, 1]} : vector<8x64xf32> to vector<8x32xf32>
    %348 = arith.mulf %347, %311 : vector<8x32xf32>
    %349 = arith.addf %346, %348 : vector<8x32xf32>
    %350 = math.tanh %349 : vector<8x32xf32>
    %351 = vector.extract_strided_slice %345 {offsets = [0, 32], sizes = [8, 32], strides = [1, 1]} : vector<8x64xf32> to vector<8x32xf32>
    %cst_72 = arith.constant 1.000000e+00 : f32
    %352 = vector.broadcast %cst_72 : f32 to vector<8x32xf32>
    %353 = arith.subf %352, %351 : vector<8x32xf32>
    %354 = arith.mulf %353, %350 : vector<8x32xf32>
    %355 = arith.mulf %351, %303 : vector<8x32xf32>
    %356 = arith.addf %354, %355 : vector<8x32xf32>
    %357 = arith.truncf %356 : vector<8x32xf32> to vector<8x32xbf16>
    %cst_73 = arith.constant dense<0.000000e+00> : vector<8x192xf32>
    %358 = tpu.matmul %357, %2, %cst_73 {dimension_numbers = #tpu.dot_dimension_numbers<[1], [0], [0], [1], [0, 0, 1, 1], [], []>} : vector<8x32xbf16>, vector<32x192xbf16>, vector<8x192xf32> -> vector<8x192xf32>
    %359 = vector.broadcast %6 : vector<1x192xf32> to vector<8x192xf32>
    %360 = arith.addf %358, %359 : vector<8x192xf32>
    %361 = vector.extract_strided_slice %360 {offsets = [0, 0], sizes = [8, 64], strides = [1, 1]} : vector<8x192xf32> to vector<8x64xf32>
    %362 = vector.extract_strided_slice %360 {offsets = [0, 64], sizes = [8, 64], strides = [1, 1]} : vector<8x192xf32> to vector<8x64xf32>
    %363 = vector.extract_strided_slice %360 {offsets = [0, 128], sizes = [8, 32], strides = [1, 1]} : vector<8x192xf32> to vector<8x32xf32>
    %364 = vector.extract_strided_slice %360 {offsets = [0, 160], sizes = [8, 32], strides = [1, 1]} : vector<8x192xf32> to vector<8x32xf32>
    %365 = arith.truncf %335 : vector<8x32xf32> to vector<8x32xbf16>
    %cst_74 = arith.constant dense<0.000000e+00> : vector<8x96xf32>
    %366 = tpu.matmul %365, %4, %cst_74 {dimension_numbers = #tpu.dot_dimension_numbers<[1], [0], [0], [1], [0, 0, 1, 1], [], []>} : vector<8x32xbf16>, vector<32x96xbf16>, vector<8x96xf32> -> vector<8x96xf32>
    %367 = vector.broadcast %7 : vector<1x96xf32> to vector<8x96xf32>
    %368 = arith.addf %366, %367 : vector<8x96xf32>
    %369 = vector.extract_strided_slice %368 {offsets = [0, 0], sizes = [8, 64], strides = [1, 1]} : vector<8x96xf32> to vector<8x64xf32>
    %370 = arith.addf %361, %369 : vector<8x64xf32>
    %cst_75 = arith.constant 0.000000e+00 : f32
    %371 = vector.broadcast %cst_75 : f32 to vector<8x64xf32>
    %372 = arith.subf %371, %370 : vector<8x64xf32>
    %373 = math.exp %372 : vector<8x64xf32>
    %cst_76 = arith.constant 1.000000e+00 : f32
    %374 = vector.broadcast %cst_76 : f32 to vector<8x64xf32>
    %375 = arith.addf %374, %373 : vector<8x64xf32>
    %cst_77 = arith.constant 1.000000e+00 : f32
    %376 = vector.broadcast %cst_77 : f32 to vector<8x64xf32>
    %377 = arith.divf %376, %375 : vector<8x64xf32>
    %378 = vector.extract_strided_slice %377 {offsets = [0, 0], sizes = [8, 32], strides = [1, 1]} : vector<8x64xf32> to vector<8x32xf32>
    %379 = vector.extract_strided_slice %368 {offsets = [0, 64], sizes = [8, 32], strides = [1, 1]} : vector<8x96xf32> to vector<8x32xf32>
    %380 = arith.mulf %378, %379 : vector<8x32xf32>
    %381 = arith.addf %363, %380 : vector<8x32xf32>
    %382 = math.tanh %381 : vector<8x32xf32>
    %383 = vector.extract_strided_slice %377 {offsets = [0, 32], sizes = [8, 32], strides = [1, 1]} : vector<8x64xf32> to vector<8x32xf32>
    %cst_78 = arith.constant 1.000000e+00 : f32
    %384 = vector.broadcast %cst_78 : f32 to vector<8x32xf32>
    %385 = arith.subf %384, %383 : vector<8x32xf32>
    %386 = arith.mulf %385, %382 : vector<8x32xf32>
    %387 = arith.mulf %383, %335 : vector<8x32xf32>
    %388 = arith.addf %386, %387 : vector<8x32xf32>
    %389 = vector.extract_strided_slice %11 {offsets = [56, 0], sizes = [8, 96], strides = [1, 1]} : vector<64x96xf32> to vector<8x96xf32>
    %390 = vector.extract_strided_slice %389 {offsets = [0, 0], sizes = [8, 64], strides = [1, 1]} : vector<8x96xf32> to vector<8x64xf32>
    %391 = arith.addf %390, %362 : vector<8x64xf32>
    %cst_79 = arith.constant 0.000000e+00 : f32
    %392 = vector.broadcast %cst_79 : f32 to vector<8x64xf32>
    %393 = arith.subf %392, %391 : vector<8x64xf32>
    %394 = math.exp %393 : vector<8x64xf32>
    %cst_80 = arith.constant 1.000000e+00 : f32
    %395 = vector.broadcast %cst_80 : f32 to vector<8x64xf32>
    %396 = arith.addf %395, %394 : vector<8x64xf32>
    %cst_81 = arith.constant 1.000000e+00 : f32
    %397 = vector.broadcast %cst_81 : f32 to vector<8x64xf32>
    %398 = arith.divf %397, %396 : vector<8x64xf32>
    %399 = vector.extract_strided_slice %389 {offsets = [0, 64], sizes = [8, 32], strides = [1, 1]} : vector<8x96xf32> to vector<8x32xf32>
    %400 = vector.extract_strided_slice %398 {offsets = [0, 0], sizes = [8, 32], strides = [1, 1]} : vector<8x64xf32> to vector<8x32xf32>
    %401 = arith.mulf %400, %364 : vector<8x32xf32>
    %402 = arith.addf %399, %401 : vector<8x32xf32>
    %403 = math.tanh %402 : vector<8x32xf32>
    %404 = vector.extract_strided_slice %398 {offsets = [0, 32], sizes = [8, 32], strides = [1, 1]} : vector<8x64xf32> to vector<8x32xf32>
    %cst_82 = arith.constant 1.000000e+00 : f32
    %405 = vector.broadcast %cst_82 : f32 to vector<8x32xf32>
    %406 = arith.subf %405, %404 : vector<8x32xf32>
    %407 = arith.mulf %406, %403 : vector<8x32xf32>
    %408 = arith.mulf %404, %356 : vector<8x32xf32>
    %409 = arith.addf %407, %408 : vector<8x32xf32>
    %410 = arith.truncf %409 : vector<8x32xf32> to vector<8x32xbf16>
    %cst_83 = arith.constant dense<0.000000e+00> : vector<8x192xf32>
    %411 = tpu.matmul %410, %2, %cst_83 {dimension_numbers = #tpu.dot_dimension_numbers<[1], [0], [0], [1], [0, 0, 1, 1], [], []>} : vector<8x32xbf16>, vector<32x192xbf16>, vector<8x192xf32> -> vector<8x192xf32>
    %412 = vector.broadcast %6 : vector<1x192xf32> to vector<8x192xf32>
    %413 = arith.addf %411, %412 : vector<8x192xf32>
    %414 = vector.extract_strided_slice %413 {offsets = [0, 0], sizes = [8, 64], strides = [1, 1]} : vector<8x192xf32> to vector<8x64xf32>
    %415 = vector.extract_strided_slice %413 {offsets = [0, 128], sizes = [8, 32], strides = [1, 1]} : vector<8x192xf32> to vector<8x32xf32>
    %416 = arith.truncf %388 : vector<8x32xf32> to vector<8x32xbf16>
    %cst_84 = arith.constant dense<0.000000e+00> : vector<8x96xf32>
    %417 = tpu.matmul %416, %4, %cst_84 {dimension_numbers = #tpu.dot_dimension_numbers<[1], [0], [0], [1], [0, 0, 1, 1], [], []>} : vector<8x32xbf16>, vector<32x96xbf16>, vector<8x96xf32> -> vector<8x96xf32>
    %418 = vector.broadcast %7 : vector<1x96xf32> to vector<8x96xf32>
    %419 = arith.addf %417, %418 : vector<8x96xf32>
    %420 = vector.extract_strided_slice %419 {offsets = [0, 0], sizes = [8, 64], strides = [1, 1]} : vector<8x96xf32> to vector<8x64xf32>
    %421 = arith.addf %414, %420 : vector<8x64xf32>
    %cst_85 = arith.constant 0.000000e+00 : f32
    %422 = vector.broadcast %cst_85 : f32 to vector<8x64xf32>
    %423 = arith.subf %422, %421 : vector<8x64xf32>
    %424 = math.exp %423 : vector<8x64xf32>
    %cst_86 = arith.constant 1.000000e+00 : f32
    %425 = vector.broadcast %cst_86 : f32 to vector<8x64xf32>
    %426 = arith.addf %425, %424 : vector<8x64xf32>
    %cst_87 = arith.constant 1.000000e+00 : f32
    %427 = vector.broadcast %cst_87 : f32 to vector<8x64xf32>
    %428 = arith.divf %427, %426 : vector<8x64xf32>
    %429 = vector.extract_strided_slice %428 {offsets = [0, 0], sizes = [8, 32], strides = [1, 1]} : vector<8x64xf32> to vector<8x32xf32>
    %430 = vector.extract_strided_slice %419 {offsets = [0, 64], sizes = [8, 32], strides = [1, 1]} : vector<8x96xf32> to vector<8x32xf32>
    %431 = arith.mulf %429, %430 : vector<8x32xf32>
    %432 = arith.addf %415, %431 : vector<8x32xf32>
    %433 = math.tanh %432 : vector<8x32xf32>
    %434 = vector.extract_strided_slice %428 {offsets = [0, 32], sizes = [8, 32], strides = [1, 1]} : vector<8x64xf32> to vector<8x32xf32>
    %cst_88 = arith.constant 1.000000e+00 : f32
    %435 = vector.broadcast %cst_88 : f32 to vector<8x32xf32>
    %436 = arith.subf %435, %434 : vector<8x32xf32>
    %437 = arith.mulf %436, %433 : vector<8x32xf32>
    %438 = arith.mulf %434, %388 : vector<8x32xf32>
    %439 = arith.addf %437, %438 : vector<8x32xf32>
    %cst_89 = arith.constant dense<0.000000e+00> : vector<8xf32>
    %440 = vector.multi_reduction <add>, %439, %cst_89 [1] : vector<8x32xf32> to vector<8xf32>
    %441 = vector.shape_cast %440 : vector<8xf32> to vector<8x1xf32>
    %cst_90 = arith.constant 3.200000e+01 : f32
    %442 = vector.broadcast %cst_90 : f32 to vector<8x1xf32>
    %443 = arith.divf %441, %442 : vector<8x1xf32>
    %444 = vector.broadcast %443 : vector<8x1xf32> to vector<8x32xf32>
    %445 = arith.subf %439, %444 : vector<8x32xf32>
    %446 = arith.mulf %445, %445 : vector<8x32xf32>
    %cst_91 = arith.constant dense<0.000000e+00> : vector<8xf32>
    %447 = vector.multi_reduction <add>, %446, %cst_91 [1] : vector<8x32xf32> to vector<8xf32>
    %448 = vector.shape_cast %447 : vector<8xf32> to vector<8x1xf32>
    %cst_92 = arith.constant 3.200000e+01 : f32
    %449 = vector.broadcast %cst_92 : f32 to vector<8x1xf32>
    %450 = arith.divf %448, %449 : vector<8x1xf32>
    %451 = vector.broadcast %443 : vector<8x1xf32> to vector<8x32xf32>
    %452 = arith.subf %439, %451 : vector<8x32xf32>
    %cst_93 = arith.constant 9.99999974E-6 : f32
    %453 = vector.broadcast %cst_93 : f32 to vector<8x1xf32>
    %454 = arith.addf %450, %453 : vector<8x1xf32>
    %455 = math.rsqrt %454 : vector<8x1xf32>
    %456 = vector.broadcast %455 : vector<8x1xf32> to vector<8x32xf32>
    %457 = arith.mulf %452, %456 : vector<8x32xf32>
    %458 = vector.broadcast %8 : vector<1x32xf32> to vector<8x32xf32>
    %459 = arith.mulf %457, %458 : vector<8x32xf32>
    %460 = vector.broadcast %9 : vector<1x32xf32> to vector<8x32xf32>
    %461 = arith.addf %459, %460 : vector<8x32xf32>
    %c0_94 = arith.constant 0 : index
    %c0_95 = arith.constant 0 : index
    %462 = vector.load %arg2[%c0_94, %c0_95] : memref<40x16xf32, #tpu.memory_space<vmem>>, vector<32x16xf32>
    %c32 = arith.constant 32 : index
    %c0_96 = arith.constant 0 : index
    %463 = vector.load %arg2[%c32, %c0_96] : memref<40x16xf32, #tpu.memory_space<vmem>>, vector<8x16xf32>
    %464 = vector.extract_strided_slice %463 {offsets = [0, 0], sizes = [1, 16], strides = [1, 1]} : vector<8x16xf32> to vector<1x16xf32>
    %465 = vector.extract_strided_slice %463 {offsets = [1, 0], sizes = [1, 16], strides = [1, 1]} : vector<8x16xf32> to vector<1x16xf32>
    %466 = vector.extract_strided_slice %463 {offsets = [2, 0], sizes = [1, 16], strides = [1, 1]} : vector<8x16xf32> to vector<1x16xf32>
    %467 = vector.extract_strided_slice %463 {offsets = [3, 0], sizes = [1, 16], strides = [1, 1]} : vector<8x16xf32> to vector<1x16xf32>
    %468 = vector.extract_strided_slice %463 {offsets = [4, 0], sizes = [1, 16], strides = [1, 1]} : vector<8x16xf32> to vector<1x16xf32>
    %469 = vector.extract_strided_slice %463 {offsets = [5, 0], sizes = [1, 1], strides = [1, 1]} : vector<8x16xf32> to vector<1x1xf32>
    %470 = arith.mulf %461, %461 : vector<8x32xf32>
    %cst_97 = arith.constant dense<0.000000e+00> : vector<8xf32>
    %471 = vector.multi_reduction <add>, %470, %cst_97 [1] : vector<8x32xf32> to vector<8xf32>
    %472 = vector.shape_cast %471 : vector<8xf32> to vector<8x1xf32>
    %cst_98 = arith.constant dense<0.000000e+00> : vector<8x16xf32>
    %473 = tpu.matmul %461, %462, %cst_98 {dimension_numbers = #tpu.dot_dimension_numbers<[1], [0], [0], [1], [0, 0, 1, 1], [], []>} : vector<8x32xf32>, vector<32x16xf32>, vector<8x16xf32> -> vector<8x16xf32>
    %474 = vector.broadcast %472 : vector<8x1xf32> to vector<8x16xf32>
    %475 = vector.broadcast %464 : vector<1x16xf32> to vector<8x16xf32>
    %476 = arith.addf %474, %475 : vector<8x16xf32>
    %cst_99 = arith.constant 2.000000e+00 : f32
    %477 = vector.broadcast %cst_99 : f32 to vector<8x16xf32>
    %478 = arith.mulf %477, %473 : vector<8x16xf32>
    %479 = arith.subf %476, %478 : vector<8x16xf32>
    %cst_100 = arith.constant 0.000000e+00 : f32
    %480 = vector.broadcast %cst_100 : f32 to vector<8x16xf32>
    %481 = arith.maximumf %479, %480 : vector<8x16xf32>
    %482 = math.sqrt %481 : vector<8x16xf32>
    %483 = vector.broadcast %466 : vector<1x16xf32> to vector<8x16xf32>
    %484 = arith.mulf %483, %482 : vector<8x16xf32>
    %cst_101 = arith.constant 1.000000e+00 : f32
    %485 = vector.broadcast %cst_101 : f32 to vector<8x16xf32>
    %486 = arith.addf %485, %484 : vector<8x16xf32>
    %487 = vector.broadcast %467 : vector<1x16xf32> to vector<8x16xf32>
    %488 = arith.mulf %487, %481 : vector<8x16xf32>
    %489 = arith.addf %486, %488 : vector<8x16xf32>
    %cst_102 = arith.constant 0.000000e+00 : f32
    %490 = vector.broadcast %cst_102 : f32 to vector<8x16xf32>
    %491 = arith.subf %490, %484 : vector<8x16xf32>
    %492 = math.exp %491 : vector<8x16xf32>
    %493 = arith.mulf %489, %492 : vector<8x16xf32>
    %494 = vector.broadcast %468 : vector<1x16xf32> to vector<8x16xf32>
    %495 = arith.mulf %494, %481 : vector<8x16xf32>
    %496 = math.exp %495 : vector<8x16xf32>
    %497 = arith.addf %493, %496 : vector<8x16xf32>
    %498 = vector.broadcast %465 : vector<1x16xf32> to vector<8x16xf32>
    %499 = arith.mulf %497, %498 : vector<8x16xf32>
    %cst_103 = arith.constant dense<0.000000e+00> : vector<8xf32>
    %500 = vector.multi_reduction <add>, %499, %cst_103 [1] : vector<8x16xf32> to vector<8xf32>
    %501 = vector.shape_cast %500 : vector<8xf32> to vector<8x1xf32>
    %502 = vector.broadcast %469 : vector<1x1xf32> to vector<8x1xf32>
    %503 = arith.addf %501, %502 : vector<8x1xf32>
    %504 = vector.shape_cast %503 : vector<8x1xf32> to vector<8x1xf32>
    %505 = vector.broadcast %504 : vector<8x1xf32> to vector<8x128xf32>
    %c0_104 = arith.constant 0 : index
    %c0_105 = arith.constant 0 : index
    %506 = vector.load %arg3[%c0_104, %c0_105] : memref<8x128xf32, #tpu.memory_space<vmem>>, vector<8x128xf32>
    tpu.vector_store %arg3[%c0_104, %c0_105], %505 {strides = array<i32>} : memref<8x128xf32, #tpu.memory_space<vmem>>, vector<8x128xf32>,
    return
  }
}

</mosaic_0001>

<llo_original>
// kernel: residual_model_svgp_forward.1
$region0: #{residual_model_svgp_forward.1}
  #allocation0 [shape = 'u32[]', space=smem, size = 0x4, offset = 0x4, fixed_abs, tag = 'smem constant byte address 0x4 - core index']
  #allocation1 [shape = 'u32[144,128]{1,0:T(1,128)}', space=vmem, size = 0x12000, scoped, tag = 'internal scratch']
  %s0 = inlined_call_operand.vmem [shape: f32[64,8], index: 0, kind: input, shape index: {}]
  %s1 = inlined_call_operand.vmem [shape: f32[80,192], index: 1, kind: input, shape index: {}]
  %s2 = inlined_call_operand.vmem [shape: f32[40,16], index: 2, kind: input, shape index: {}]
  %s3 = inlined_call_operand.vmem [shape: f32[8,128], index: 3, kind: output, shape index: {}]
  %s4 = sld [smem:[#allocation0]]
  $region22: #{residual_model_svgp_forward.1} parent=0
    _
  %s6 = ssub.s32 1, %s4
  %s7 = scalar_select 0, %s6, %s4
  // Predicated region
  $region2: #{residual_model_svgp_forward.1} parent=0 // pred_check
    _
  $region3: #{residual_model_svgp_forward.1} parent=0 // pred_check_branch
    %9 = sbr.rel (0) target = $region5
  $region4: #{residual_model_svgp_forward.1} parent=0 // pred_region
    _
  $region5: #{residual_model_svgp_forward.1} parent=0 // pred_fallthru
    _
  // Predicated region
  $region6: #{residual_model_svgp_forward.1} parent=0 // pred_check
    _
  $region7: #{residual_model_svgp_forward.1} parent=0 // pred_check_branch
    %11 = sbr.rel (0) target = $region9
  $region8: #{residual_model_svgp_forward.1} parent=0 // pred_region
    _
  $region9: #{residual_model_svgp_forward.1} parent=0 // pred_fallthru
    _
  // Predicated region
  $region10: #{residual_model_svgp_forward.1} parent=0 // pred_check
    _
  $region11: #{residual_model_svgp_forward.1} parent=0 // pred_check_branch
    %13 = sbr.rel (0) target = $region13
  $region12: #{residual_model_svgp_forward.1} parent=0 // pred_region
    _
  $region13: #{residual_model_svgp_forward.1} parent=0 // pred_fallthru
    _
  %v15 = vld [vmem:[%s1] sm:$0xff]
  %v16 = vld [vmem:[%s1 + $0x10] sm:$0xff]
  %v17 = vld [vmem:[%s1 + $0x18] sm:$0xff]
  %v18 = vld [vmem:[%s1 + $0x20] sm:$0xff]
  %v19 = vld [vmem:[%s1 + $0x28] sm:$0xff]
  %v20 = vld [vmem:[%s1 + $0x30] sm:$0xff]
  %v21 = vld [vmem:[%s1 + $0x38] sm:$0xff]
  %v22 = vld [vmem:[%s1 + $0x40] sm:$0xff]
  %v23 = vld [vmem:[%s1 + $0x48] sm:$0xff]
  %v24 = vpack.c.bf16 %v18, %v16
  %v25 = vpack.c.bf16 %v19, %v17
  %v26 = vpack.c.bf16 %v22, %v20
  %v27 = vpack.c.bf16 %v23, %v21
  %v28 = vld [vmem:[%s1 + $0x50] sm:$0xff]
  %v29 = vld [vmem:[%s1 + $0x60] sm:$0xff]
  %v30 = vld [vmem:[%s1 + $0x70] sm:$0xff]
  %v31 = vld [vmem:[%s1 + $0x80] sm:$0xff]
  %v32 = vpack.c.bf16 %v29, %v28
  %v33 = vpack.c.bf16 %v31, %v30
  %v34 = vld [vmem:[%s1 + $0x90] sm:$0xff]
  %v35 = vld [vmem:[%s1 + $0x98] sm:$0xff]
  %v36 = vld [vmem:[%s0] sm:$0xff]
  %v37 = vld [vmem:[%s0 + $0x8] sm:$0xff]
  %v38 = vld [vmem:[%s0 + $0x10] sm:$0xff]
  %v39 = vld [vmem:[%s0 + $0x18] sm:$0xff]
  %v40 = vld [vmem:[%s0 + $0x20] sm:$0xff]
  %v41 = vld [vmem:[%s0 + $0x28] sm:$0xff]
  %v42 = vld [vmem:[%s0 + $0x30] sm:$0xff]
  %v43 = vld [vmem:[%s0 + $0x38] sm:$0xff]
  %vm44 = vcmask 64512
  %v46 = vsel %vm44, %v36, 0
  %v49 = vsel %vm44, %v37, 0
  %v52 = vsel %vm44, %v38, 0
  %v55 = vsel %vm44, %v39, 0
  %v58 = vsel %vm44, %v40, 0
  %v61 = vsel %vm44, %v41, 0
  %v64 = vsel %vm44, %v42, 0
  %v67 = vsel %vm44, %v43, 0
  %69 = vmatprep.subr.mxu0 0.0
  %70 = vmatpush1.msra.mxu0 0.0
  %71 = vmatprep.subr.mxu0 0.0
  %72 = vmatpush1.msra.mxu0 0.0
  %73 = vmatprep.subr.mxu0 0.0
  %74 = vmatpush1.msra.mxu0 0.0
  %75 = vmatprep.subr.mxu0 0.0
  %76 = vmatpush1.msra.mxu0 0.0
  %77 = vmatprep.subr.mxu0 0.0
  %78 = vmatpush1.msra.mxu0 0.0
  %79 = vmatprep.subr.mxu0 0.0
  %80 = vmatpush1.msra.mxu0 0.0
  %81 = vmatprep.subr.mxu0 0.0
  %82 = vmatpush1.msra.mxu0 0.0
  %83 = vmatprep.subr.mxu0 0.0
  %84 = vmatpush1.msra.mxu0 0.0
  %85 = vmatprep.subr.mxu0 0.0
  %86 = vmatpush1.msra.mxu0 0.0
  %87 = vmatprep.subr.mxu0 0.0
  %88 = vmatpush1.msra.mxu0 0.0
  %89 = vmatprep.subr.mxu0 0.0
  %90 = vmatpush1.msra.mxu0 0.0
  %91 = vmatprep.subr.mxu0 0.0
  %92 = vmatpush1.msra.mxu0 0.0
  %93 = vmatprep.subr.mxu0 0.0
  %94 = vmatpush1.msra.mxu0 0.0
  %95 = vmatprep.subr.mxu0 0.0
  %96 = vmatpush1.msra.mxu0 0.0
  %97 = vmatprep.subr.mxu0 0.0
  %98 = vmatpush1.msra.mxu0 0.0
  %99 = vmatprep.subr.mxu0 0.0
  %100 = vmatpush1.msra.mxu0 %v15
  %101 = vmatprep.subr.mxu0 0.0
  %102 = vmatpush2.msra.mxu0 0.0
  %103 = vmatprep.subr.mxu0 0.0
  %104 = vmatpush2.msra.mxu0 0.0
  %105 = vmatprep.subr.mxu0 0.0
  %106 = vmatpush2.msra.mxu0 0.0
  %107 = vmatprep.subr.mxu0 0.0
  %108 = vmatpush2.msra.mxu0 0.0
  %109 = vmatprep.subr.mxu0 0.0
  %110 = vmatpush2.msra.mxu0 0.0
  %111 = vmatprep.subr.mxu0 0.0
  %112 = vmatpush2.msra.mxu0 0.0
  %113 = vmatprep.subr.mxu0 0.0
  %114 = vmatpush2.msra.mxu0 0.0
  %115 = vmatprep.subr.mxu0 0.0
  %116 = vmatpush2.msra.mxu0 0.0
  %117 = vmatprep.subr.mxu0 0.0
  %118 = vmatpush2.msra.mxu0 0.0
  %119 = vmatprep.subr.mxu0 0.0
  %120 = vmatpush2.msra.mxu0 0.0
  %121 = vmatprep.subr.mxu0 0.0
  %122 = vmatpush2.msra.mxu0 0.0
  %123 = vmatprep.subr.mxu0 0.0
  %124 = vmatpush2.msra.mxu0 0.0
  %125 = vmatprep.subr.mxu0 0.0
  %126 = vmatpush2.msra.mxu0 0.0
  %127 = vmatprep.subr.mxu0 0.0
  %128 = vmatpush2.msra.mxu0 0.0
  %129 = vmatprep.subr.mxu0 0.0
  %130 = vmatpush2.msra.mxu0 0.0
  %131 = vmatprep.subr.mxu0 0.0
  %132 = vmatpush2.msra.mxu0 0.0
  %133 = vmatprep.mubr.f32.mxu0 0.0
  %134 = vmatmul.mubr.f32.gmra.mxu0 %v46
  %v135 = vpop.f32.mrf.mxu0
  %v136 = vadd.f32 0.0, %v135
  %v137 = vpop.f32.mrf.mxu0
  %138 = vmatprep.mubr.f32.mxu0 0.0
  %139 = vmatmul.mubr.f32.gmra.mxu0 %v49
  %v140 = vpop.f32.mrf.mxu0
  %v141 = vadd.f32 0.0, %v140
  %v142 = vpop.f32.mrf.mxu0
  %143 = vmatprep.mubr.f32.mxu0 0.0
  %144 = vmatmul.mubr.f32.gmra.mxu0 %v52
  %v145 = vpop.f32.mrf.mxu0
  %v146 = vadd.f32 0.0, %v145
  %v147 = vpop.f32.mrf.mxu0
  %148 = vmatprep.mubr.f32.mxu0 0.0
  %149 = vmatmul.mubr.f32.gmra.mxu0 %v55
  %v150 = vpop.f32.mrf.mxu0
  %v151 = vadd.f32 0.0, %v150
  %v152 = vpop.f32.mrf.mxu0
  %153 = vmatprep.mubr.f32.mxu0 0.0
  %154 = vmatmul.mubr.f32.gmra.mxu0 %v58
  %v155 = vpop.f32.mrf.mxu0
  %v156 = vadd.f32 0.0, %v155
  %v157 = vpop.f32.mrf.mxu0
  %158 = vmatprep.mubr.f32.mxu0 0.0
  %159 = vmatmul.mubr.f32.gmra.mxu0 %v61
  %v160 = vpop.f32.mrf.mxu0
  %v161 = vadd.f32 0.0, %v160
  %v162 = vpop.f32.mrf.mxu0
  %163 = vmatprep.mubr.f32.mxu0 0.0
  %164 = vmatmul.mubr.f32.gmra.mxu0 %v64
  %v165 = vpop.f32.mrf.mxu0
  %v166 = vadd.f32 0.0, %v165
  %v167 = vpop.f32.mrf.mxu0
  %168 = vmatprep.mubr.f32.mxu0 0.0
  %169 = vmatmul.mubr.f32.gmra.mxu0 %v67
  %v170 = vpop.f32.mrf.mxu0
  %v171 = vadd.f32 0.0, %v170
  %v172 = vpop.f32.mrf.mxu0
  %173 = vdwg.mxu0
  %v174 = vlaneseq
  %v175 = vshrl.u32 %v174, 7
  %v176 = vsub.s32 0, %v175
  %v177 = vrot.slane %v35, %v176
  %v178 = vadd.f32 %v136, 0.0
  %v179 = vsub.f32 0.0, %v178
  %v180 = vmul.f32 %v179, 1.442695
  %v181 = vpow.pop %v180
  %v182 = vadd.f32 %v181, 1.0
  %v183 = vrcp.pop %v182
  %v184 = vmul.f32 1.0, %v183
  %186 = vrot.lane.b32.xlu0 %v177, 96
  %v187 = vpop.permute.xlu0 %186
  %v189 = vmul.f32 %v184, %v187
  %191 = vrot.lane.b32.xlu0 %v189, 64
  %v192 = vpop.permute.xlu0 %191
  %v194 = vadd.f32 %v136, %v192
  %v195 = vtanh.pop %v194
  %v196 = vsub.f32 1.0, %v184
  %198 = vrot.lane.b32.xlu0 %v195, 96
  %v199 = vpop.permute.xlu0 %198
  %v201 = vmul.f32 %v196, %v199
  %v202 = vmul.f32 %v184, 0.0
  %v203 = vadd.f32 %v201, %v202
  %v204 = vpack.c.bf16 %v203, %v203
  %v205 = vlaneseq
  %v206 = vshrl.u32 %v205, 7
  %v207 = vsub.s32 0, %v206
  %v208 = vrot.slane %v34, %v207
  %210 = vrot.lane.b32.xlu0 %v204, 96
  %v211 = vpop.permute.xlu0 %210
  %vm212 = vcmask 261120
  %v214 = vsel %vm212, %v211, 0
  %216 = vmatprep.subr.bf16.mxu0 0
  %217 = vmatpush1.bf16.msra.mxu0 0
  %218 = vmatprep.subr.bf16.mxu0 0
  %219 = vmatpush1.bf16.msra.mxu0 0
  %220 = vmatprep.subr.bf16.mxu0 0
  %221 = vmatpush1.bf16.msra.mxu0 0
  %222 = vmatprep.subr.bf16.mxu0 0
  %223 = vmatpush1.bf16.msra.mxu0 0
  %224 = vmatprep.subr.bf16.mxu0 0
  %225 = vmatpush1.bf16.msra.mxu0 0
  %226 = vmatprep.subr.bf16.mxu0 0
  %227 = vmatpush1.bf16.msra.mxu0 0
  %228 = vmatprep.subr.bf16.mxu0 %v27
  %229 = vmatpush1.bf16.msra.mxu0 %v26
  %230 = vmatprep.subr.bf16.mxu0 %v25
  %231 = vmatpush1.bf16.msra.mxu0 %v24
  %232 = vmatprep.subr.bf16.mxu0 0
  %233 = vmatpush2.bf16.msra.mxu0 0
  %234 = vmatprep.subr.bf16.mxu0 0
  %235 = vmatpush2.bf16.msra.mxu0 0
  %236 = vmatprep.subr.bf16.mxu0 0
  %237 = vmatpush2.bf16.msra.mxu0 0
  %238 = vmatprep.subr.bf16.mxu0 0
  %239 = vmatpush2.bf16.msra.mxu0 0
  %240 = vmatprep.subr.bf16.mxu0 0
  %241 = vmatpush2.bf16.msra.mxu0 0
  %242 = vmatprep.subr.bf16.mxu0 0
  %243 = vmatpush2.bf16.msra.mxu0 0
  %244 = vmatprep.subr.bf16.mxu0 0
  %245 = vmatpush2.bf16.msra.mxu0 0
  %246 = vmatprep.subr.bf16.mxu0 0
  %247 = vmatpush2.bf16.msra.mxu0 0
  %248 = vmatprep.mubr.bf16.mxu0 0
  %249 = vmatmul.mubr.bf16.gmra.mxu0 %v214
  %v250 = vpop.f32.mrf.mxu0
  %v251 = vadd.f32 %v208, %v250
  %v252 = vpop.f32.mrf.mxu0
  %v253 = vadd.f32 %v177, %v252
  %v254 = vpop.f32.mrf.mxu0
  %v255 = vpop.f32.mrf.mxu0
  %256 = vdwg.mxu0
  %v257 = vlaneseq
  %v258 = vshrl.u32 %v257, 7
  %v259 = vsub.s32 1, %v258
  %v260 = vrot.slane %v34, %v259
  %v262 = vsel %vm212, 0, 0
  %264 = vmatprep.subr.bf16.mxu0 0
  %265 = vmatpush1.bf16.msra.mxu0 0
  %266 = vmatprep.subr.bf16.mxu0 0
  %267 = vmatpush1.bf16.msra.mxu0 0
  %268 = vmatprep.subr.bf16.mxu0 0
  %269 = vmatpush1.bf16.msra.mxu0 0
  %270 = vmatprep.subr.bf16.mxu0 0
  %271 = vmatpush1.bf16.msra.mxu0 0
  %272 = vmatprep.subr.bf16.mxu0 0
  %273 = vmatpush1.bf16.msra.mxu0 0
  %274 = vmatprep.subr.bf16.mxu0 0
  %275 = vmatpush1.bf16.msra.mxu0 0
  %276 = vmatprep.subr.bf16.mxu0 0
  %277 = vmatpush1.bf16.msra.mxu0 %v33
  %278 = vmatprep.subr.bf16.mxu0 0
  %279 = vmatpush1.bf16.msra.mxu0 %v32
  %280 = vmatprep.subr.bf16.mxu0 0
  %281 = vmatpush2.bf16.msra.mxu0 0
  %282 = vmatprep.subr.bf16.mxu0 0
  %283 = vmatpush2.bf16.msra.mxu0 0
  %284 = vmatprep.subr.bf16.mxu0 0
  %285 = vmatpush2.bf16.msra.mxu0 0
  %286 = vmatprep.subr.bf16.mxu0 0
  %287 = vmatpush2.bf16.msra.mxu0 0
  %288 = vmatprep.subr.bf16.mxu0 0
  %289 = vmatpush2.bf16.msra.mxu0 0
  %290 = vmatprep.subr.bf16.mxu0 0
  %291 = vmatpush2.bf16.msra.mxu0 0
  %292 = vmatprep.subr.bf16.mxu0 0
  %293 = vmatpush2.bf16.msra.mxu0 0
  %294 = vmatprep.subr.bf16.mxu0 0
  %295 = vmatpush2.bf16.msra.mxu0 0
  %296 = vmatprep.mubr.bf16.mxu0 0
  %297 = vmatmul.mubr.bf16.gmra.mxu0 %v262
  %v298 = vpop.f32.mrf.mxu0
  %v299 = vadd.f32 %v260, %v298
  %v300 = vpop.f32.mrf.mxu0
  %v301 = vpop.f32.mrf.mxu0
  %v302 = vpop.f32.mrf.mxu0
  %303 = vdwg.mxu0
  %v304 = vadd.f32 %v251, %v299
  %v305 = vsub.f32 0.0, %v304
  %v306 = vmul.f32 %v305, 1.442695
  %v307 = vpow.pop %v306
  %v308 = vadd.f32 %v307, 1.0
  %v309 = vrcp.pop %v308
  %v310 = vmul.f32 1.0, %v309
  %312 = vrot.lane.b32.xlu0 %v299, 64
  %v313 = vpop.permute.xlu0 %312
  %v315 = vmul.f32 %v310, %v313
  %v316 = vadd.f32 %v253, %v315
  %v317 = vtanh.pop %v316
  %v318 = vsub.f32 1.0, %v310
  %320 = vrot.lane.b32.xlu0 %v317, 32
  %v321 = vpop.permute.xlu0 %320
  %v323 = vmul.f32 %v318, %v321
  %v324 = vmul.f32 %v310, 0.0
  %v325 = vadd.f32 %v323, %v324
  %327 = vrot.lane.b32.xlu0 %v251, 64
  %v328 = vpop.permute.xlu0 %327
  %v330 = vadd.f32 %v141, %v328
  %v331 = vsub.f32 0.0, %v330
  %v332 = vmul.f32 %v331, 1.442695
  %v333 = vpow.pop %v332
  %v334 = vadd.f32 %v333, 1.0
  %v335 = vrcp.pop %v334
  %v336 = vmul.f32 1.0, %v335
  %338 = vrot.lane.b32.xlu0 %v253, 96
  %v339 = vpop.permute.xlu0 %338
  %v341 = vmul.f32 %v336, %v339
  %343 = vrot.lane.b32.xlu0 %v341, 64
  %v344 = vpop.permute.xlu0 %343
  %v346 = vadd.f32 %v141, %v344
  %v347 = vtanh.pop %v346
  %v348 = vsub.f32 1.0, %v336
  %350 = vrot.lane.b32.xlu0 %v347, 96
  %v351 = vpop.permute.xlu0 %350
  %v353 = vmul.f32 %v348, %v351
  %v354 = vmul.f32 %v336, %v203
  %v355 = vadd.f32 %v353, %v354
  %v356 = vpack.c.bf16 %v355, %v355
  %358 = vrot.lane.b32.xlu0 %v356, 96
  %v359 = vpop.permute.xlu0 %358
  %v361 = vsel %vm212, %v359, 0
  %363 = vmatprep.subr.bf16.mxu0 0
  %364 = vmatpush1.bf16.msra.mxu0 0
  %365 = vmatprep.subr.bf16.mxu0 0
  %366 = vmatpush1.bf16.msra.mxu0 0
  %367 = vmatprep.subr.bf16.mxu0 0
  %368 = vmatpush1.bf16.msra.mxu0 0
  %369 = vmatprep.subr.bf16.mxu0 0
  %370 = vmatpush1.bf16.msra.mxu0 0
  %371 = vmatprep.subr.bf16.mxu0 0
  %372 = vmatpush1.bf16.msra.mxu0 0
  %373 = vmatprep.subr.bf16.mxu0 0
  %374 = vmatpush1.bf16.msra.mxu0 0
  %375 = vmatprep.subr.bf16.mxu0 %v27
  %376 = vmatpush1.bf16.msra.mxu0 %v26
  %377 = vmatprep.subr.bf16.mxu0 %v25
  %378 = vmatpush1.bf16.msra.mxu0 %v24
  %379 = vmatprep.subr.bf16.mxu0 0
  %380 = vmatpush2.bf16.msra.mxu0 0
  %381 = vmatprep.subr.bf16.mxu0 0
  %382 = vmatpush2.bf16.msra.mxu0 0
  %383 = vmatprep.subr.bf16.mxu0 0
  %384 = vmatpush2.bf16.msra.mxu0 0
  %385 = vmatprep.subr.bf16.mxu0 0
  %386 = vmatpush2.bf16.msra.mxu0 0
  %387 = vmatprep.subr.bf16.mxu0 0
  %388 = vmatpush2.bf16.msra.mxu0 0
  %389 = vmatprep.subr.bf16.mxu0 0
  %390 = vmatpush2.bf16.msra.mxu0 0
  %391 = vmatprep.subr.bf16.mxu0 0
  %392 = vmatpush2.bf16.msra.mxu0 0
  %393 = vmatprep.subr.bf16.mxu0 0
  %394 = vmatpush2.bf16.msra.mxu0 0
  %395 = vmatprep.mubr.bf16.mxu0 0
  %396 = vmatmul.mubr.bf16.gmra.mxu0 %v361
  %v397 = vpop.f32.mrf.mxu0
  %v398 = vadd.f32 %v208, %v397
  %v399 = vpop.f32.mrf.mxu0
  %v400 = vadd.f32 %v177, %v399
  %v401 = vpop.f32.mrf.mxu0
  %v402 = vpop.f32.mrf.mxu0
  %403 = vdwg.mxu0
  %v404 = vpack.c.bf16 %v325, %v325
  %406 = vrot.lane.b32.xlu0 %v404, 96
  %v407 = vpop.permute.xlu0 %406
  %v409 = vsel %vm212, %v407, 0
  %411 = vmatprep.subr.bf16.mxu0 0
  %412 = vmatpush1.bf16.msra.mxu0 0
  %413 = vmatprep.subr.bf16.mxu0 0
  %414 = vmatpush1.bf16.msra.mxu0 0
  %415 = vmatprep.subr.bf16.mxu0 0
  %416 = vmatpush1.bf16.msra.mxu0 0
  %417 = vmatprep.subr.bf16.mxu0 0
  %418 = vmatpush1.bf16.msra.mxu0 0
  %419 = vmatprep.subr.bf16.mxu0 0
  %420 = vmatpush1.bf16.msra.mxu0 0
  %421 = vmatprep.subr.bf16.mxu0 0
  %422 = vmatpush1.bf16.msra.mxu0 0
  %423 = vmatprep.subr.bf16.mxu0 0
  %424 = vmatpush1.bf16.msra.mxu0 %v33
  %425 = vmatprep.subr.bf16.mxu0 0
  %426 = vmatpush1.bf16.msra.mxu0 %v32
  %427 = vmatprep.subr.bf16.mxu0 0
  %428 = vmatpush2.bf16.msra.mxu0 0
  %429 = vmatprep.subr.bf16.mxu0 0
  %430 = vmatpush2.bf16.msra.mxu0 0
  %431 = vmatprep.subr.bf16.mxu0 0
  %432 = vmatpush2.bf16.msra.mxu0 0
  %433 = vmatprep.subr.bf16.mxu0 0
  %434 = vmatpush2.bf16.msra.mxu0 0
  %435 = vmatprep.subr.bf16.mxu0 0
  %436 = vmatpush2.bf16.msra.mxu0 0
  %437 = vmatprep.subr.bf16.mxu0 0
  %438 = vmatpush2.bf16.msra.mxu0 0
  %439 = vmatprep.subr.bf16.mxu0 0
  %440 = vmatpush2.bf16.msra.mxu0 0
  %441 = vmatprep.subr.bf16.mxu0 0
  %442 = vmatpush2.bf16.msra.mxu0 0
  %443 = vmatprep.mubr.bf16.mxu0 0
  %444 = vmatmul.mubr.bf16.gmra.mxu0 %v409
  %v445 = vpop.f32.mrf.mxu0
  %v446 = vadd.f32 %v260, %v445
  %v447 = vpop.f32.mrf.mxu0
  %v448 = vpop.f32.mrf.mxu0
  %v449 = vpop.f32.mrf.mxu0
  %450 = vdwg.mxu0
  %v451 = vadd.f32 %v398, %v446
  %v452 = vsub.f32 0.0, %v451
  %v453 = vmul.f32 %v452, 1.442695
  %v454 = vpow.pop %v453
  %v455 = vadd.f32 %v454, 1.0
  %v456 = vrcp.pop %v455
  %v457 = vmul.f32 1.0, %v456
  %459 = vrot.lane.b32.xlu0 %v446, 64
  %v460 = vpop.permute.xlu0 %459
  %v462 = vmul.f32 %v457, %v460
  %v463 = vadd.f32 %v400, %v462
  %v464 = vtanh.pop %v463
  %v465 = vsub.f32 1.0, %v457
  %467 = vrot.lane.b32.xlu0 %v464, 32
  %v468 = vpop.permute.xlu0 %467
  %v470 = vmul.f32 %v465, %v468
  %v471 = vmul.f32 %v457, %v325
  %v472 = vadd.f32 %v470, %v471
  %474 = vrot.lane.b32.xlu0 %v398, 64
  %v475 = vpop.permute.xlu0 %474
  %v477 = vadd.f32 %v146, %v475
  %v478 = vsub.f32 0.0, %v477
  %v479 = vmul.f32 %v478, 1.442695
  %v480 = vpow.pop %v479
  %v481 = vadd.f32 %v480, 1.0
  %v482 = vrcp.pop %v481
  %v483 = vmul.f32 1.0, %v482
  %485 = vrot.lane.b32.xlu0 %v400, 96
  %v486 = vpop.permute.xlu0 %485
  %v488 = vmul.f32 %v483, %v486
  %490 = vrot.lane.b32.xlu0 %v488, 64
  %v491 = vpop.permute.xlu0 %490
  %v493 = vadd.f32 %v146, %v491
  %v494 = vtanh.pop %v493
  %v495 = vsub.f32 1.0, %v483
  %497 = vrot.lane.b32.xlu0 %v494, 96
  %v498 = vpop.permute.xlu0 %497
  %v500 = vmul.f32 %v495, %v498
  %v501 = vmul.f32 %v483, %v355
  %v502 = vadd.f32 %v500, %v501
  %v503 = vpack.c.bf16 %v502, %v502
  %505 = vrot.lane.b32.xlu0 %v503, 96
  %v506 = vpop.permute.xlu0 %505
  %v508 = vsel %vm212, %v506, 0
  %510 = vmatprep.subr.bf16.mxu0 0
  %511 = vmatpush1.bf16.msra.mxu0 0
  %512 = vmatprep.subr.bf16.mxu0 0
  %513 = vmatpush1.bf16.msra.mxu0 0
  %514 = vmatprep.subr.bf16.mxu0 0
  %515 = vmatpush1.bf16.msra.mxu0 0
  %516 = vmatprep.subr.bf16.mxu0 0
  %517 = vmatpush1.bf16.msra.mxu0 0
  %518 = vmatprep.subr.bf16.mxu0 0
  %519 = vmatpush1.bf16.msra.mxu0 0
  %520 = vmatprep.subr.bf16.mxu0 0
  %521 = vmatpush1.bf16.msra.mxu0 0
  %522 = vmatprep.subr.bf16.mxu0 %v27
  %523 = vmatpush1.bf16.msra.mxu0 %v26
  %524 = vmatprep.subr.bf16.mxu0 %v25
  %525 = vmatpush1.bf16.msra.mxu0 %v24
  %526 = vmatprep.subr.bf16.mxu0 0
  %527 = vmatpush2.bf16.msra.mxu0 0
  %528 = vmatprep.subr.bf16.mxu0 0
  %529 = vmatpush2.bf16.msra.mxu0 0
  %530 = vmatprep.subr.bf16.mxu0 0
  %531 = vmatpush2.bf16.msra.mxu0 0
  %532 = vmatprep.subr.bf16.mxu0 0
  %533 = vmatpush2.bf16.msra.mxu0 0
  %534 = vmatprep.subr.bf16.mxu0 0
  %535 = vmatpush2.bf16.msra.mxu0 0
  %536 = vmatprep.subr.bf16.mxu0 0
  %537 = vmatpush2.bf16.msra.mxu0 0
  %538 = vmatprep.subr.bf16.mxu0 0
  %539 = vmatpush2.bf16.msra.mxu0 0
  %540 = vmatprep.subr.bf16.mxu0 0
  %541 = vmatpush2.bf16.msra.mxu0 0
  %542 = vmatprep.mubr.bf16.mxu0 0
  %543 = vmatmul.mubr.bf16.gmra.mxu0 %v508
  %v544 = vpop.f32.mrf.mxu0
  %v545 = vadd.f32 %v208, %v544
  %v546 = vpop.f32.mrf.mxu0
  %v547 = vadd.f32 %v177, %v546
  %v548 = vpop.f32.mrf.mxu0
  %v549 = vpop.f32.mrf.mxu0
  %550 = vdwg.mxu0
  %v551 = vpack.c.bf16 %v472, %v472
  %553 = vrot.lane.b32.xlu0 %v551, 96
  %v554 = vpop.permute.xlu0 %553
  %v556 = vsel %vm212, %v554, 0
  %558 = vmatprep.subr.bf16.mxu0 0
  %559 = vmatpush1.bf16.msra.mxu0 0
  %560 = vmatprep.subr.bf16.mxu0 0
  %561 = vmatpush1.bf16.msra.mxu0 0
  %562 = vmatprep.subr.bf16.mxu0 0
  %563 = vmatpush1.bf16.msra.mxu0 0
  %564 = vmatprep.subr.bf16.mxu0 0
  %565 = vmatpush1.bf16.msra.mxu0 0
  %566 = vmatprep.subr.bf16.mxu0 0
  %567 = vmatpush1.bf16.msra.mxu0 0
  %568 = vmatprep.subr.bf16.mxu0 0
  %569 = vmatpush1.bf16.msra.mxu0 0
  %570 = vmatprep.subr.bf16.mxu0 0
  %571 = vmatpush1.bf16.msra.mxu0 %v33
  %572 = vmatprep.subr.bf16.mxu0 0
  %573 = vmatpush1.bf16.msra.mxu0 %v32
  %574 = vmatprep.subr.bf16.mxu0 0
  %575 = vmatpush2.bf16.msra.mxu0 0
  %576 = vmatprep.subr.bf16.mxu0 0
  %577 = vmatpush2.bf16.msra.mxu0 0
  %578 = vmatprep.subr.bf16.mxu0 0
  %579 = vmatpush2.bf16.msra.mxu0 0
  %580 = vmatprep.subr.bf16.mxu0 0
  %581 = vmatpush2.bf16.msra.mxu0 0
  %582 = vmatprep.subr.bf16.mxu0 0
  %583 = vmatpush2.bf16.msra.mxu0 0
  %584 = vmatprep.subr.bf16.mxu0 0
  %585 = vmatpush2.bf16.msra.mxu0 0
  %586 = vmatprep.subr.bf16.mxu0 0
  %587 = vmatpush2.bf16.msra.mxu0 0
  %588 = vmatprep.subr.bf16.mxu0 0
  %589 = vmatpush2.bf16.msra.mxu0 0
  %590 = vmatprep.mubr.bf16.mxu0 0
  %591 = vmatmul.mubr.bf16.gmra.mxu0 %v556
  %v592 = vpop.f32.mrf.mxu0
  %v593 = vadd.f32 %v260, %v592
  %v594 = vpop.f32.mrf.mxu0
  %v595 = vpop.f32.mrf.mxu0
  %v596 = vpop.f32.mrf.mxu0
  %597 = vdwg.mxu0
  %v598 = vadd.f32 %v545, %v593
  %v599 = vsub.f32 0.0, %v598
  %v600 = vmul.f32 %v599, 1.442695
  %v601 = vpow.pop %v600
  %v602 = vadd.f32 %v601, 1.0
  %v603 = vrcp.pop %v602
  %v604 = vmul.f32 1.0, %v603
  %606 = vrot.lane.b32.xlu0 %v593, 64
  %v607 = vpop.permute.xlu0 %606
  %v609 = vmul.f32 %v604, %v607
  %v610 = vadd.f32 %v547, %v609
  %v611 = vtanh.pop %v610
  %v612 = vsub.f32 1.0, %v604
  %614 = vrot.lane.b32.xlu0 %v611, 32
  %v615 = vpop.permute.xlu0 %614
  %v617 = vmul.f32 %v612, %v615
  %v618 = vmul.f32 %v604, %v472
  %v619 = vadd.f32 %v617, %v618
  %621 = vrot.lane.b32.xlu0 %v545, 64
  %v622 = vpop.permute.xlu0 %621
  %v624 = vadd.f32 %v151, %v622
  %v625 = vsub.f32 0.0, %v624
  %v626 = vmul.f32 %v625, 1.442695
  %v627 = vpow.pop %v626
  %v628 = vadd.f32 %v627, 1.0
  %v629 = vrcp.pop %v628
  %v630 = vmul.f32 1.0, %v629
  %632 = vrot.lane.b32.xlu0 %v547, 96
  %v633 = vpop.permute.xlu0 %632
  %v635 = vmul.f32 %v630, %v633
  %637 = vrot.lane.b32.xlu0 %v635, 64
  %v638 = vpop.permute.xlu0 %637
  %v640 = vadd.f32 %v151, %v638
  %v641 = vtanh.pop %v640
  %v642 = vsub.f32 1.0, %v630
  %644 = vrot.lane.b32.xlu0 %v641, 96
  %v645 = vpop.permute.xlu0 %644
  %v647 = vmul.f32 %v642, %v645
  %v648 = vmul.f32 %v630, %v502
  %v649 = vadd.f32 %v647, %v648
  %v650 = vpack.c.bf16 %v649, %v649
  %652 = vrot.lane.b32.xlu0 %v650, 96
  %v653 = vpop.permute.xlu0 %652
  %v655 = vsel %vm212, %v653, 0
  %657 = vmatprep.subr.bf16.mxu0 0
  %658 = vmatpush1.bf16.msra.mxu0 0
  %659 = vmatprep.subr.bf16.mxu0 0
  %660 = vmatpush1.bf16.msra.mxu0 0
  %661 = vmatprep.subr.bf16.mxu0 0
  %662 = vmatpush1.bf16.msra.mxu0 0
  %663 = vmatprep.subr.bf16.mxu0 0
  %664 = vmatpush1.bf16.msra.mxu0 0
  %665 = vmatprep.subr.bf16.mxu0 0
  %666 = vmatpush1.bf16.msra.mxu0 0
  %667 = vmatprep.subr.bf16.mxu0 0
  %668 = vmatpush1.bf16.msra.mxu0 0
  %669 = vmatprep.subr.bf16.mxu0 %v27
  %670 = vmatpush1.bf16.msra.mxu0 %v26
  %671 = vmatprep.subr.bf16.mxu0 %v25
  %672 = vmatpush1.bf16.msra.mxu0 %v24
  %673 = vmatprep.subr.bf16.mxu0 0
  %674 = vmatpush2.bf16.msra.mxu0 0
  %675 = vmatprep.subr.bf16.mxu0 0
  %676 = vmatpush2.bf16.msra.mxu0 0
  %677 = vmatprep.subr.bf16.mxu0 0
  %678 = vmatpush2.bf16.msra.mxu0 0
  %679 = vmatprep.subr.bf16.mxu0 0
  %680 = vmatpush2.bf16.msra.mxu0 0
  %681 = vmatprep.subr.bf16.mxu0 0
  %682 = vmatpush2.bf16.msra.mxu0 0
  %683 = vmatprep.subr.bf16.mxu0 0
  %684 = vmatpush2.bf16.msra.mxu0 0
  %685 = vmatprep.subr.bf16.mxu0 0
  %686 = vmatpush2.bf16.msra.mxu0 0
  %687 = vmatprep.subr.bf16.mxu0 0
  %688 = vmatpush2.bf16.msra.mxu0 0
  %689 = vmatprep.mubr.bf16.mxu0 0
  %690 = vmatmul.mubr.bf16.gmra.mxu0 %v655
  %v691 = vpop.f32.mrf.mxu0
  %v692 = vadd.f32 %v208, %v691
  %v693 = vpop.f32.mrf.mxu0
  %v694 = vadd.f32 %v177, %v693
  %v695 = vpop.f32.mrf.mxu0
  %v696 = vpop.f32.mrf.mxu0
  %697 = vdwg.mxu0
  %v698 = vpack.c.bf16 %v619, %v619
  %700 = vrot.lane.b32.xlu0 %v698, 96
  %v701 = vpop.permute.xlu0 %700
  %v703 = vsel %vm212, %v701, 0
  %705 = vmatprep.subr.bf16.mxu0 0
  %706 = vmatpush1.bf16.msra.mxu0 0
  %707 = vmatprep.subr.bf16.mxu0 0
  %708 = vmatpush1.bf16.msra.mxu0 0
  %709 = vmatprep.subr.bf16.mxu0 0
  %710 = vmatpush1.bf16.msra.mxu0 0
  %711 = vmatprep.subr.bf16.mxu0 0
  %712 = vmatpush1.bf16.msra.mxu0 0
  %713 = vmatprep.subr.bf16.mxu0 0
  %714 = vmatpush1.bf16.msra.mxu0 0
  %715 = vmatprep.subr.bf16.mxu0 0
  %716 = vmatpush1.bf16.msra.mxu0 0
  %717 = vmatprep.subr.bf16.mxu0 0
  %718 = vmatpush1.bf16.msra.mxu0 %v33
  %719 = vmatprep.subr.bf16.mxu0 0
  %720 = vmatpush1.bf16.msra.mxu0 %v32
  %721 = vmatprep.subr.bf16.mxu0 0
  %722 = vmatpush2.bf16.msra.mxu0 0
  %723 = vmatprep.subr.bf16.mxu0 0
  %724 = vmatpush2.bf16.msra.mxu0 0
  %725 = vmatprep.subr.bf16.mxu0 0
  %726 = vmatpush2.bf16.msra.mxu0 0
  %727 = vmatprep.subr.bf16.mxu0 0
  %728 = vmatpush2.bf16.msra.mxu0 0
  %729 = vmatprep.subr.bf16.mxu0 0
  %730 = vmatpush2.bf16.msra.mxu0 0
  %731 = vmatprep.subr.bf16.mxu0 0
  %732 = vmatpush2.bf16.msra.mxu0 0
  %733 = vmatprep.subr.bf16.mxu0 0
  %734 = vmatpush2.bf16.msra.mxu0 0
  %735 = vmatprep.subr.bf16.mxu0 0
  %736 = vmatpush2.bf16.msra.mxu0 0
  %737 = vmatprep.mubr.bf16.mxu0 0
  %738 = vmatmul.mubr.bf16.gmra.mxu0 %v703
  %v739 = vpop.f32.mrf.mxu0
  %v740 = vadd.f32 %v260, %v739
  %v741 = vpop.f32.mrf.mxu0
  %v742 = vpop.f32.mrf.mxu0
  %v743 = vpop.f32.mrf.mxu0
  %744 = vdwg.mxu0
  %v745 = vadd.f32 %v692, %v740
  %v746 = vsub.f32 0.0, %v745
  %v747 = vmul.f32 %v746, 1.442695
  %v748 = vpow.pop %v747
  %v749 = vadd.f32 %v748, 1.0
  %v750 = vrcp.pop %v749
  %v751 = vmul.f32 1.0, %v750
  %753 = vrot.lane.b32.xlu0 %v740, 64
  %v754 = vpop.permute.xlu0 %753
  %v756 = vmul.f32 %v751, %v754
  %v757 = vadd.f32 %v694, %v756
  %v758 = vtanh.pop %v757
  %v759 = vsub.f32 1.0, %v751
  %761 = vrot.lane.b32.xlu0 %v758, 32
  %v762 = vpop.permute.xlu0 %761
  %v764 = vmul.f32 %v759, %v762
  %v765 = vmul.f32 %v751, %v619
  %v766 = vadd.f32 %v764, %v765
  %768 = vrot.lane.b32.xlu0 %v692, 64
  %v769 = vpop.permute.xlu0 %768
  %v771 = vadd.f32 %v156, %v769
  %v772 = vsub.f32 0.0, %v771
  %v773 = vmul.f32 %v772, 1.442695
  %v774 = vpow.pop %v773
  %v775 = vadd.f32 %v774, 1.0
  %v776 = vrcp.pop %v775
  %v777 = vmul.f32 1.0, %v776
  %779 = vrot.lane.b32.xlu0 %v694, 96
  %v780 = vpop.permute.xlu0 %779
  %v782 = vmul.f32 %v777, %v780
  %784 = vrot.lane.b32.xlu0 %v782, 64
  %v785 = vpop.permute.xlu0 %784
  %v787 = vadd.f32 %v156, %v785
  %v788 = vtanh.pop %v787
  %v789 = vsub.f32 1.0, %v777
  %791 = vrot.lane.b32.xlu0 %v788, 96
  %v792 = vpop.permute.xlu0 %791
  %v794 = vmul.f32 %v789, %v792
  %v795 = vmul.f32 %v777, %v649
  %v796 = vadd.f32 %v794, %v795
  %v797 = vpack.c.bf16 %v796, %v796
  %799 = vrot.lane.b32.xlu0 %v797, 96
  %v800 = vpop.permute.xlu0 %799
  %v802 = vsel %vm212, %v800, 0
  %804 = vmatprep.subr.bf16.mxu0 0
  %805 = vmatpush1.bf16.msra.mxu0 0
  %806 = vmatprep.subr.bf16.mxu0 0
  %807 = vmatpush1.bf16.msra.mxu0 0
  %808 = vmatprep.subr.bf16.mxu0 0
  %809 = vmatpush1.bf16.msra.mxu0 0
  %810 = vmatprep.subr.bf16.mxu0 0
  %811 = vmatpush1.bf16.msra.mxu0 0
  %812 = vmatprep.subr.bf16.mxu0 0
  %813 = vmatpush1.bf16.msra.mxu0 0
  %814 = vmatprep.subr.bf16.mxu0 0
  %815 = vmatpush1.bf16.msra.mxu0 0
  %816 = vmatprep.subr.bf16.mxu0 %v27
  %817 = vmatpush1.bf16.msra.mxu0 %v26
  %818 = vmatprep.subr.bf16.mxu0 %v25
  %819 = vmatpush1.bf16.msra.mxu0 %v24
  %820 = vmatprep.subr.bf16.mxu0 0
  %821 = vmatpush2.bf16.msra.mxu0 0
  %822 = vmatprep.subr.bf16.mxu0 0
  %823 = vmatpush2.bf16.msra.mxu0 0
  %824 = vmatprep.subr.bf16.mxu0 0
  %825 = vmatpush2.bf16.msra.mxu0 0
  %826 = vmatprep.subr.bf16.mxu0 0
  %827 = vmatpush2.bf16.msra.mxu0 0
  %828 = vmatprep.subr.bf16.mxu0 0
  %829 = vmatpush2.bf16.msra.mxu0 0
  %830 = vmatprep.subr.bf16.mxu0 0
  %831 = vmatpush2.bf16.msra.mxu0 0
  %832 = vmatprep.subr.bf16.mxu0 0
  %833 = vmatpush2.bf16.msra.mxu0 0
  %834 = vmatprep.subr.bf16.mxu0 0
  %835 = vmatpush2.bf16.msra.mxu0 0
  %836 = vmatprep.mubr.bf16.mxu0 0
  %837 = vmatmul.mubr.bf16.gmra.mxu0 %v802
  %v838 = vpop.f32.mrf.mxu0
  %v839 = vadd.f32 %v208, %v838
  %v840 = vpop.f32.mrf.mxu0
  %v841 = vadd.f32 %v177, %v840
  %v842 = vpop.f32.mrf.mxu0
  %v843 = vpop.f32.mrf.mxu0
  %844 = vdwg.mxu0
  %v845 = vpack.c.bf16 %v766, %v766
  %847 = vrot.lane.b32.xlu0 %v845, 96
  %v848 = vpop.permute.xlu0 %847
  %v850 = vsel %vm212, %v848, 0
  %852 = vmatprep.subr.bf16.mxu0 0
  %853 = vmatpush1.bf16.msra.mxu0 0
  %854 = vmatprep.subr.bf16.mxu0 0
  %855 = vmatpush1.bf16.msra.mxu0 0
  %856 = vmatprep.subr.bf16.mxu0 0
  %857 = vmatpush1.bf16.msra.mxu0 0
  %858 = vmatprep.subr.bf16.mxu0 0
  %859 = vmatpush1.bf16.msra.mxu0 0
  %860 = vmatprep.subr.bf16.mxu0 0
  %861 = vmatpush1.bf16.msra.mxu0 0
  %862 = vmatprep.subr.bf16.mxu0 0
  %863 = vmatpush1.bf16.msra.mxu0 0
  %864 = vmatprep.subr.bf16.mxu0 0
  %865 = vmatpush1.bf16.msra.mxu0 %v33
  %866 = vmatprep.subr.bf16.mxu0 0
  %867 = vmatpush1.bf16.msra.mxu0 %v32
  %868 = vmatprep.subr.bf16.mxu0 0
  %869 = vmatpush2.bf16.msra.mxu0 0
  %870 = vmatprep.subr.bf16.mxu0 0
  %871 = vmatpush2.bf16.msra.mxu0 0
  %872 = vmatprep.subr.bf16.mxu0 0
  %873 = vmatpush2.bf16.msra.mxu0 0
  %874 = vmatprep.subr.bf16.mxu0 0
  %875 = vmatpush2.bf16.msra.mxu0 0
  %876 = vmatprep.subr.bf16.mxu0 0
  %877 = vmatpush2.bf16.msra.mxu0 0
  %878 = vmatprep.subr.bf16.mxu0 0
  %879 = vmatpush2.bf16.msra.mxu0 0
  %880 = vmatprep.subr.bf16.mxu0 0
  %881 = vmatpush2.bf16.msra.mxu0 0
  %882 = vmatprep.subr.bf16.mxu0 0
  %883 = vmatpush2.bf16.msra.mxu0 0
  %884 = vmatprep.mubr.bf16.mxu0 0
  %885 = vmatmul.mubr.bf16.gmra.mxu0 %v850
  %v886 = vpop.f32.mrf.mxu0
  %v887 = vadd.f32 %v260, %v886
  %v888 = vpop.f32.mrf.mxu0
  %v889 = vpop.f32.mrf.mxu0
  %v890 = vpop.f32.mrf.mxu0
  %891 = vdwg.mxu0
  %v892 = vadd.f32 %v839, %v887
  %v893 = vsub.f32 0.0, %v892
  %v894 = vmul.f32 %v893, 1.442695
  %v895 = vpow.pop %v894
  %v896 = vadd.f32 %v895, 1.0
  %v897 = vrcp.pop %v896
  %v898 = vmul.f32 1.0, %v897
  %900 = vrot.lane.b32.xlu0 %v887, 64
  %v901 = vpop.permute.xlu0 %900
  %v903 = vmul.f32 %v898, %v901
  %v904 = vadd.f32 %v841, %v903
  %v905 = vtanh.pop %v904
  %v906 = vsub.f32 1.0, %v898
  %908 = vrot.lane.b32.xlu0 %v905, 32
  %v909 = vpop.permute.xlu0 %908
  %v911 = vmul.f32 %v906, %v909
  %v912 = vmul.f32 %v898, %v766
  %v913 = vadd.f32 %v911, %v912
  %915 = vrot.lane.b32.xlu0 %v839, 64
  %v916 = vpop.permute.xlu0 %915
  %v918 = vadd.f32 %v161, %v916
  %v919 = vsub.f32 0.0, %v918
  %v920 = vmul.f32 %v919, 1.442695
  %v921 = vpow.pop %v920
  %v922 = vadd.f32 %v921, 1.0
  %v923 = vrcp.pop %v922
  %v924 = vmul.f32 1.0, %v923
  %926 = vrot.lane.b32.xlu0 %v841, 96
  %v927 = vpop.permute.xlu0 %926
  %v929 = vmul.f32 %v924, %v927
  %931 = vrot.lane.b32.xlu0 %v929, 64
  %v932 = vpop.permute.xlu0 %931
  %v934 = vadd.f32 %v161, %v932
  %v935 = vtanh.pop %v934
  %v936 = vsub.f32 1.0, %v924
  %938 = vrot.lane.b32.xlu0 %v935, 96
  %v939 = vpop.permute.xlu0 %938
  %v941 = vmul.f32 %v936, %v939
  %v942 = vmul.f32 %v924, %v796
  %v943 = vadd.f32 %v941, %v942
  %v944 = vpack.c.bf16 %v943, %v943
  %946 = vrot.lane.b32.xlu0 %v944, 96
  %v947 = vpop.permute.xlu0 %946
  %v949 = vsel %vm212, %v947, 0
  %951 = vmatprep.subr.bf16.mxu0 0
  %952 = vmatpush1.bf16.msra.mxu0 0
  %953 = vmatprep.subr.bf16.mxu0 0
  %954 = vmatpush1.bf16.msra.mxu0 0
  %955 = vmatprep.subr.bf16.mxu0 0
  %956 = vmatpush1.bf16.msra.mxu0 0
  %957 = vmatprep.subr.bf16.mxu0 0
  %958 = vmatpush1.bf16.msra.mxu0 0
  %959 = vmatprep.subr.bf16.mxu0 0
  %960 = vmatpush1.bf16.msra.mxu0 0
  %961 = vmatprep.subr.bf16.mxu0 0
  %962 = vmatpush1.bf16.msra.mxu0 0
  %963 = vmatprep.subr.bf16.mxu0 %v27
  %964 = vmatpush1.bf16.msra.mxu0 %v26
  %965 = vmatprep.subr.bf16.mxu0 %v25
  %966 = vmatpush1.bf16.msra.mxu0 %v24
  %967 = vmatprep.subr.bf16.mxu0 0
  %968 = vmatpush2.bf16.msra.mxu0 0
  %969 = vmatprep.subr.bf16.mxu0 0
  %970 = vmatpush2.bf16.msra.mxu0 0
  %971 = vmatprep.subr.bf16.mxu0 0
  %972 = vmatpush2.bf16.msra.mxu0 0
  %973 = vmatprep.subr.bf16.mxu0 0
  %974 = vmatpush2.bf16.msra.mxu0 0
  %975 = vmatprep.subr.bf16.mxu0 0
  %976 = vmatpush2.bf16.msra.mxu0 0
  %977 = vmatprep.subr.bf16.mxu0 0
  %978 = vmatpush2.bf16.msra.mxu0 0
  %979 = vmatprep.subr.bf16.mxu0 0
  %980 = vmatpush2.bf16.msra.mxu0 0
  %981 = vmatprep.subr.bf16.mxu0 0
  %982 = vmatpush2.bf16.msra.mxu0 0
  %983 = vmatprep.mubr.bf16.mxu0 0
  %984 = vmatmul.mubr.bf16.gmra.mxu0 %v949
  %v985 = vpop.f32.mrf.mxu0
  %v986 = vadd.f32 %v208, %v985
  %v987 = vpop.f32.mrf.mxu0
  %v988 = vadd.f32 %v177, %v987
  %v989 = vpop.f32.mrf.mxu0
  %v990 = vpop.f32.mrf.mxu0
  %991 = vdwg.mxu0
  %v992 = vpack.c.bf16 %v913, %v913
  %994 = vrot.lane.b32.xlu0 %v992, 96
  %v995 = vpop.permute.xlu0 %994
  %v997 = vsel %vm212, %v995, 0
  %999 = vmatprep.subr.bf16.mxu0 0
  %1000 = vmatpush1.bf16.msra.mxu0 0
  %1001 = vmatprep.subr.bf16.mxu0 0
  %1002 = vmatpush1.bf16.msra.mxu0 0
  %1003 = vmatprep.subr.bf16.mxu0 0
  %1004 = vmatpush1.bf16.msra.mxu0 0
  %1005 = vmatprep.subr.bf16.mxu0 0
  %1006 = vmatpush1.bf16.msra.mxu0 0
  %1007 = vmatprep.subr.bf16.mxu0 0
  %1008 = vmatpush1.bf16.msra.mxu0 0
  %1009 = vmatprep.subr.bf16.mxu0 0
  %1010 = vmatpush1.bf16.msra.mxu0 0
  %1011 = vmatprep.subr.bf16.mxu0 0
  %1012 = vmatpush1.bf16.msra.mxu0 %v33
  %1013 = vmatprep.subr.bf16.mxu0 0
  %1014 = vmatpush1.bf16.msra.mxu0 %v32
  %1015 = vmatprep.subr.bf16.mxu0 0
  %1016 = vmatpush2.bf16.msra.mxu0 0
  %1017 = vmatprep.subr.bf16.mxu0 0
  %1018 = vmatpush2.bf16.msra.mxu0 0
  %1019 = vmatprep.subr.bf16.mxu0 0
  %1020 = vmatpush2.bf16.msra.mxu0 0
  %1021 = vmatprep.subr.bf16.mxu0 0
  %1022 = vmatpush2.bf16.msra.mxu0 0
  %1023 = vmatprep.subr.bf16.mxu0 0
  %1024 = vmatpush2.bf16.msra.mxu0 0
  %1025 = vmatprep.subr.bf16.mxu0 0
  %1026 = vmatpush2.bf16.msra.mxu0 0
  %1027 = vmatprep.subr.bf16.mxu0 0
  %1028 = vmatpush2.bf16.msra.mxu0 0
  %1029 = vmatprep.subr.bf16.mxu0 0
  %1030 = vmatpush2.bf16.msra.mxu0 0
  %1031 = vmatprep.mubr.bf16.mxu0 0
  %1032 = vmatmul.mubr.bf16.gmra.mxu0 %v997
  %v1033 = vpop.f32.mrf.mxu0
  %v1034 = vadd.f32 %v260, %v1033
  %v1035 = vpop.f32.mrf.mxu0
  %v1036 = vpop.f32.mrf.mxu0
  %v1037 = vpop.f32.mrf.mxu0
  %1038 = vdwg.mxu0
  %v1039 = vadd.f32 %v986, %v1034
  %v1040 = vsub.f32 0.0, %v1039
  %v1041 = vmul.f32 %v1040, 1.442695
  %v1042 = vpow.pop %v1041
  %v1043 = vadd.f32 %v1042, 1.0
  %v1044 = vrcp.pop %v1043
  %v1045 = vmul.f32 1.0, %v1044
  %1047 = vrot.lane.b32.xlu0 %v1034, 64
  %v1048 = vpop.permute.xlu0 %1047
  %v1050 = vmul.f32 %v1045, %v1048
  %v1051 = vadd.f32 %v988, %v1050
  %v1052 = vtanh.pop %v1051
  %v1053 = vsub.f32 1.0, %v1045
  %1055 = vrot.lane.b32.xlu0 %v1052, 32
  %v1056 = vpop.permute.xlu0 %1055
  %v1058 = vmul.f32 %v1053, %v1056
  %v1059 = vmul.f32 %v1045, %v913
  %v1060 = vadd.f32 %v1058, %v1059
  %1062 = vrot.lane.b32.xlu0 %v986, 64
  %v1063 = vpop.permute.xlu0 %1062
  %v1065 = vadd.f32 %v166, %v1063
  %v1066 = vsub.f32 0.0, %v1065
  %v1067 = vmul.f32 %v1066, 1.442695
  %v1068 = vpow.pop %v1067
  %v1069 = vadd.f32 %v1068, 1.0
  %v1070 = vrcp.pop %v1069
  %v1071 = vmul.f32 1.0, %v1070
  %1073 = vrot.lane.b32.xlu0 %v988, 96
  %v1074 = vpop.permute.xlu0 %1073
  %v1076 = vmul.f32 %v1071, %v1074
  %1078 = vrot.lane.b32.xlu0 %v1076, 64
  %v1079 = vpop.permute.xlu0 %1078
  %v1081 = vadd.f32 %v166, %v1079
  %v1082 = vtanh.pop %v1081
  %v1083 = vsub.f32 1.0, %v1071
  %1085 = vrot.lane.b32.xlu0 %v1082, 96
  %v1086 = vpop.permute.xlu0 %1085
  %v1088 = vmul.f32 %v1083, %v1086
  %v1089 = vmul.f32 %v1071, %v943
  %v1090 = vadd.f32 %v1088, %v1089
  %v1091 = vpack.c.bf16 %v1090, %v1090
  %1093 = vrot.lane.b32.xlu0 %v1091, 96
  %v1094 = vpop.permute.xlu0 %1093
  %v1096 = vsel %vm212, %v1094, 0
  %1098 = vmatprep.subr.bf16.mxu0 0
  %1099 = vmatpush1.bf16.msra.mxu0 0
  %1100 = vmatprep.subr.bf16.mxu0 0
  %1101 = vmatpush1.bf16.msra.mxu0 0
  %1102 = vmatprep.subr.bf16.mxu0 0
  %1103 = vmatpush1.bf16.msra.mxu0 0
  %1104 = vmatprep.subr.bf16.mxu0 0
  %1105 = vmatpush1.bf16.msra.mxu0 0
  %1106 = vmatprep.subr.bf16.mxu0 0
  %1107 = vmatpush1.bf16.msra.mxu0 0
  %1108 = vmatprep.subr.bf16.mxu0 0
  %1109 = vmatpush1.bf16.msra.mxu0 0
  %1110 = vmatprep.subr.bf16.mxu0 %v27
  %1111 = vmatpush1.bf16.msra.mxu0 %v26
  %1112 = vmatprep.subr.bf16.mxu0 %v25
  %1113 = vmatpush1.bf16.msra.mxu0 %v24
  %1114 = vmatprep.subr.bf16.mxu0 0
  %1115 = vmatpush2.bf16.msra.mxu0 0
  %1116 = vmatprep.subr.bf16.mxu0 0
  %1117 = vmatpush2.bf16.msra.mxu0 0
  %1118 = vmatprep.subr.bf16.mxu0 0
  %1119 = vmatpush2.bf16.msra.mxu0 0
  %1120 = vmatprep.subr.bf16.mxu0 0
  %1121 = vmatpush2.bf16.msra.mxu0 0
  %1122 = vmatprep.subr.bf16.mxu0 0
  %1123 = vmatpush2.bf16.msra.mxu0 0
  %1124 = vmatprep.subr.bf16.mxu0 0
  %1125 = vmatpush2.bf16.msra.mxu0 0
  %1126 = vmatprep.subr.bf16.mxu0 0
  %1127 = vmatpush2.bf16.msra.mxu0 0
  %1128 = vmatprep.subr.bf16.mxu0 0
  %1129 = vmatpush2.bf16.msra.mxu0 0
  %1130 = vmatprep.mubr.bf16.mxu0 0
  %1131 = vmatmul.mubr.bf16.gmra.mxu0 %v1096
  %v1132 = vpop.f32.mrf.mxu0
  %v1133 = vadd.f32 %v208, %v1132
  %v1134 = vpop.f32.mrf.mxu0
  %v1135 = vadd.f32 %v177, %v1134
  %v1136 = vpop.f32.mrf.mxu0
  %v1137 = vpop.f32.mrf.mxu0
  %1138 = vdwg.mxu0
  %v1139 = vpack.c.bf16 %v1060, %v1060
  %1141 = vrot.lane.b32.xlu0 %v1139, 96
  %v1142 = vpop.permute.xlu0 %1141
  %v1144 = vsel %vm212, %v1142, 0
  %1146 = vmatprep.subr.bf16.mxu0 0
  %1147 = vmatpush1.bf16.msra.mxu0 0
  %1148 = vmatprep.subr.bf16.mxu0 0
  %1149 = vmatpush1.bf16.msra.mxu0 0
  %1150 = vmatprep.subr.bf16.mxu0 0
  %1151 = vmatpush1.bf16.msra.mxu0 0
  %1152 = vmatprep.subr.bf16.mxu0 0
  %1153 = vmatpush1.bf16.msra.mxu0 0
  %1154 = vmatprep.subr.bf16.mxu0 0
  %1155 = vmatpush1.bf16.msra.mxu0 0
  %1156 = vmatprep.subr.bf16.mxu0 0
  %1157 = vmatpush1.bf16.msra.mxu0 0
  %1158 = vmatprep.subr.bf16.mxu0 0
  %1159 = vmatpush1.bf16.msra.mxu0 %v33
  %1160 = vmatprep.subr.bf16.mxu0 0
  %1161 = vmatpush1.bf16.msra.mxu0 %v32
  %1162 = vmatprep.subr.bf16.mxu0 0
  %1163 = vmatpush2.bf16.msra.mxu0 0
  %1164 = vmatprep.subr.bf16.mxu0 0
  %1165 = vmatpush2.bf16.msra.mxu0 0
  %1166 = vmatprep.subr.bf16.mxu0 0
  %1167 = vmatpush2.bf16.msra.mxu0 0
  %1168 = vmatprep.subr.bf16.mxu0 0
  %1169 = vmatpush2.bf16.msra.mxu0 0
  %1170 = vmatprep.subr.bf16.mxu0 0
  %1171 = vmatpush2.bf16.msra.mxu0 0
  %1172 = vmatprep.subr.bf16.mxu0 0
  %1173 = vmatpush2.bf16.msra.mxu0 0
  %1174 = vmatprep.subr.bf16.mxu0 0
  %1175 = vmatpush2.bf16.msra.mxu0 0
  %1176 = vmatprep.subr.bf16.mxu0 0
  %1177 = vmatpush2.bf16.msra.mxu0 0
  %1178 = vmatprep.mubr.bf16.mxu0 0
  %1179 = vmatmul.mubr.bf16.gmra.mxu0 %v1144
  %v1180 = vpop.f32.mrf.mxu0
  %v1181 = vadd.f32 %v260, %v1180
  %v1182 = vpop.f32.mrf.mxu0
  %v1183 = vpop.f32.mrf.mxu0
  %v1184 = vpop.f32.mrf.mxu0
  %1185 = vdwg.mxu0
  %v1186 = vadd.f32 %v1133, %v1181
  %v1187 = vsub.f32 0.0, %v1186
  %v1188 = vmul.f32 %v1187, 1.442695
  %v1189 = vpow.pop %v1188
  %v1190 = vadd.f32 %v1189, 1.0
  %v1191 = vrcp.pop %v1190
  %v1192 = vmul.f32 1.0, %v1191
  %1194 = vrot.lane.b32.xlu0 %v1181, 64
  %v1195 = vpop.permute.xlu0 %1194
  %v1197 = vmul.f32 %v1192, %v1195
  %v1198 = vadd.f32 %v1135, %v1197
  %v1199 = vtanh.pop %v1198
  %v1200 = vsub.f32 1.0, %v1192
  %1202 = vrot.lane.b32.xlu0 %v1199, 32
  %v1203 = vpop.permute.xlu0 %1202
  %v1205 = vmul.f32 %v1200, %v1203
  %v1206 = vmul.f32 %v1192, %v1060
  %v1207 = vadd.f32 %v1205, %v1206
  %1209 = vrot.lane.b32.xlu0 %v1133, 64
  %v1210 = vpop.permute.xlu0 %1209
  %v1212 = vadd.f32 %v171, %v1210
  %v1213 = vsub.f32 0.0, %v1212
  %v1214 = vmul.f32 %v1213, 1.442695
  %v1215 = vpow.pop %v1214
  %v1216 = vadd.f32 %v1215, 1.0
  %v1217 = vrcp.pop %v1216
  %v1218 = vmul.f32 1.0, %v1217
  %1220 = vrot.lane.b32.xlu0 %v1135, 96
  %v1221 = vpop.permute.xlu0 %1220
  %v1223 = vmul.f32 %v1218, %v1221
  %1225 = vrot.lane.b32.xlu0 %v1223, 64
  %v1226 = vpop.permute.xlu0 %1225
  %v1228 = vadd.f32 %v171, %v1226
  %v1229 = vtanh.pop %v1228
  %v1230 = vsub.f32 1.0, %v1218
  %1232 = vrot.lane.b32.xlu0 %v1229, 96
  %v1233 = vpop.permute.xlu0 %1232
  %v1235 = vmul.f32 %v1230, %v1233
  %v1236 = vmul.f32 %v1218, %v1090
  %v1237 = vadd.f32 %v1235, %v1236
  %v1238 = vpack.c.bf16 %v1237, %v1237
  %1240 = vrot.lane.b32.xlu0 %v1238, 96
  %v1241 = vpop.permute.xlu0 %1240
  %v1243 = vsel %vm212, %v1241, 0
  %1245 = vmatprep.subr.bf16.mxu0 0
  %1246 = vmatpush1.bf16.msra.mxu0 0
  %1247 = vmatprep.subr.bf16.mxu0 0
  %1248 = vmatpush1.bf16.msra.mxu0 0
  %1249 = vmatprep.subr.bf16.mxu0 0
  %1250 = vmatpush1.bf16.msra.mxu0 0
  %1251 = vmatprep.subr.bf16.mxu0 0
  %1252 = vmatpush1.bf16.msra.mxu0 0
  %1253 = vmatprep.subr.bf16.mxu0 0
  %1254 = vmatpush1.bf16.msra.mxu0 0
  %1255 = vmatprep.subr.bf16.mxu0 0
  %1256 = vmatpush1.bf16.msra.mxu0 0
  %1257 = vmatprep.subr.bf16.mxu0 %v27
  %1258 = vmatpush1.bf16.msra.mxu0 %v26
  %1259 = vmatprep.subr.bf16.mxu0 %v25
  %1260 = vmatpush1.bf16.msra.mxu0 %v24
  %1261 = vmatprep.subr.bf16.mxu0 0
  %1262 = vmatpush2.bf16.msra.mxu0 0
  %1263 = vmatprep.subr.bf16.mxu0 0
  %1264 = vmatpush2.bf16.msra.mxu0 0
  %1265 = vmatprep.subr.bf16.mxu0 0
  %1266 = vmatpush2.bf16.msra.mxu0 0
  %1267 = vmatprep.subr.bf16.mxu0 0
  %1268 = vmatpush2.bf16.msra.mxu0 0
  %1269 = vmatprep.subr.bf16.mxu0 0
  %1270 = vmatpush2.bf16.msra.mxu0 0
  %1271 = vmatprep.subr.bf16.mxu0 0
  %1272 = vmatpush2.bf16.msra.mxu0 0
  %1273 = vmatprep.subr.bf16.mxu0 0
  %1274 = vmatpush2.bf16.msra.mxu0 0
  %1275 = vmatprep.subr.bf16.mxu0 0
  %1276 = vmatpush2.bf16.msra.mxu0 0
  %1277 = vmatprep.mubr.bf16.mxu0 0
  %1278 = vmatmul.mubr.bf16.gmra.mxu0 %v1243
  %v1279 = vpop.f32.mrf.mxu0
  %v1280 = vadd.f32 %v208, %v1279
  %v1281 = vpop.f32.mrf.mxu0
  %v1282 = vadd.f32 %v177, %v1281
  %v1283 = vpop.f32.mrf.mxu0
  %v1284 = vpop.f32.mrf.mxu0
  %1285 = vdwg.mxu0
  %v1286 = vpack.c.bf16 %v1207, %v1207
  %1288 = vrot.lane.b32.xlu0 %v1286, 96
  %v1289 = vpop.permute.xlu0 %1288
  %v1291 = vsel %vm212, %v1289, 0
  %1293 = vmatprep.subr.bf16.mxu0 0
  %1294 = vmatpush1.bf16.msra.mxu0 0
  %1295 = vmatprep.subr.bf16.mxu0 0
  %1296 = vmatpush1.bf16.msra.mxu0 0
  %1297 = vmatprep.subr.bf16.mxu0 0
  %1298 = vmatpush1.bf16.msra.mxu0 0
  %1299 = vmatprep.subr.bf16.mxu0 0
  %1300 = vmatpush1.bf16.msra.mxu0 0
  %1301 = vmatprep.subr.bf16.mxu0 0
  %1302 = vmatpush1.bf16.msra.mxu0 0
  %1303 = vmatprep.subr.bf16.mxu0 0
  %1304 = vmatpush1.bf16.msra.mxu0 0
  %1305 = vmatprep.subr.bf16.mxu0 0
  %1306 = vmatpush1.bf16.msra.mxu0 %v33
  %1307 = vmatprep.subr.bf16.mxu0 0
  %1308 = vmatpush1.bf16.msra.mxu0 %v32
  %1309 = vmatprep.subr.bf16.mxu0 0
  %1310 = vmatpush2.bf16.msra.mxu0 0
  %1311 = vmatprep.subr.bf16.mxu0 0
  %1312 = vmatpush2.bf16.msra.mxu0 0
  %1313 = vmatprep.subr.bf16.mxu0 0
  %1314 = vmatpush2.bf16.msra.mxu0 0
  %1315 = vmatprep.subr.bf16.mxu0 0
  %1316 = vmatpush2.bf16.msra.mxu0 0
  %1317 = vmatprep.subr.bf16.mxu0 0
  %1318 = vmatpush2.bf16.msra.mxu0 0
  %1319 = vmatprep.subr.bf16.mxu0 0
  %1320 = vmatpush2.bf16.msra.mxu0 0
  %1321 = vmatprep.subr.bf16.mxu0 0
  %1322 = vmatpush2.bf16.msra.mxu0 0
  %1323 = vmatprep.subr.bf16.mxu0 0
  %1324 = vmatpush2.bf16.msra.mxu0 0
  %1325 = vmatprep.mubr.bf16.mxu0 0
  %1326 = vmatmul.mubr.bf16.gmra.mxu0 %v1291
  %v1327 = vpop.f32.mrf.mxu0
  %v1328 = vadd.f32 %v260, %v1327
  %v1329 = vpop.f32.mrf.mxu0
  %v1330 = vpop.f32.mrf.mxu0
  %v1331 = vpop.f32.mrf.mxu0
  %1332 = vdwg.mxu0
  %v1333 = vadd.f32 %v1280, %v1328
  %v1334 = vsub.f32 0.0, %v1333
  %v1335 = vmul.f32 %v1334, 1.442695
  %v1336 = vpow.pop %v1335
  %v1337 = vadd.f32 %v1336, 1.0
  %v1338 = vrcp.pop %v1337
  %v1339 = vmul.f32 1.0, %v1338
  %1341 = vrot.lane.b32.xlu0 %v1328, 64
  %v1342 = vpop.permute.xlu0 %1341
  %v1344 = vmul.f32 %v1339, %v1342
  %v1345 = vadd.f32 %v1282, %v1344
  %v1346 = vtanh.pop %v1345
  %v1347 = vsub.f32 1.0, %v1339
  %1349 = vrot.lane.b32.xlu0 %v1346, 32
  %v1350 = vpop.permute.xlu0 %1349
  %v1352 = vmul.f32 %v1347, %v1350
  %v1353 = vmul.f32 %v1339, %v1207
  %v1354 = vadd.f32 %v1352, %v1353
  %1356 = vrot.lane.b32.xlu0 %v1354, 96
  %v1357 = vpop.permute.xlu0 %1356
  %v1359 = vsel %vm212, %v1357, 0.0
  %1360 = vadd.xlane.f32.xlu0 %v1359
  %v1361 = vpop.xlane.xlu0 %1360
  %v1362 = vrcp.pop 32.0
  %v1363 = vmul.f32 %v1361, %v1362
  %v1364 = vsub.f32 %v1354, %v1363
  %v1365 = vmul.f32 %v1364, %v1364
  %1367 = vrot.lane.b32.xlu0 %v1365, 96
  %v1368 = vpop.permute.xlu0 %1367
  %v1370 = vsel %vm212, %v1368, 0.0
  %1371 = vadd.xlane.f32.xlu0 %v1370
  %v1372 = vpop.xlane.xlu0 %1371
  %v1373 = vmul.f32 %v1372, %v1362
  %v1374 = vadd.f32 %v1373, 1e-05
  %v1375 = vrsqrt.pop %v1374
  %v1376 = vmul.f32 %v1364, %v1375
  %v1377 = vlaneseq
  %v1378 = vshrl.u32 %v1377, 7
  %v1379 = vsub.s32 2, %v1378
  %v1380 = vrot.slane %v34, %v1379
  %1382 = vrot.lane.b32.xlu0 %v1380, 32
  %v1383 = vpop.permute.xlu0 %1382
  %v1385 = vmul.f32 %v1376, %v1383
  %v1386 = vadd.f32 %v1385, %v1380
  %v1387 = vld [vmem:[%s2] sm:$0xff]
  %v1388 = vld [vmem:[%s2 + $0x8] sm:$0xff]
  %v1389 = vld [vmem:[%s2 + $0x10] sm:$0xff]
  %v1390 = vld [vmem:[%s2 + $0x18] sm:$0xff]
  %v1391 = vld [vmem:[%s2 + $0x20] sm:$0xff]
  %v1392 = vmul.f32 %v1386, %v1386
  %1394 = vrot.lane.b32.xlu0 %v1392, 96
  %v1395 = vpop.permute.xlu0 %1394
  %v1397 = vsel %vm212, %v1395, 0.0
  %1398 = vadd.xlane.f32.xlu0 %v1397
  %v1399 = vpop.xlane.xlu0 %1398
  %1401 = vrot.lane.b32.xlu0 %v1386, 96
  %v1402 = vpop.permute.xlu0 %1401
  %v1403 = vsel %vm212, %v1402, 0
  %1405 = vmatprep.subr.mxu0 0.0
  %1406 = vmatpush1.msra.mxu0 0.0
  %1407 = vmatprep.subr.mxu0 0.0
  %1408 = vmatpush1.msra.mxu0 0.0
  %1409 = vmatprep.subr.mxu0 0.0
  %1410 = vmatpush1.msra.mxu0 0.0
  %1411 = vmatprep.subr.mxu0 0.0
  %1412 = vmatpush1.msra.mxu0 0.0
  %1413 = vmatprep.subr.mxu0 0.0
  %1414 = vmatpush1.msra.mxu0 0.0
  %1415 = vmatprep.subr.mxu0 0.0
  %1416 = vmatpush1.msra.mxu0 0.0
  %1417 = vmatprep.subr.mxu0 0.0
  %1418 = vmatpush1.msra.mxu0 0.0
  %1419 = vmatprep.subr.mxu0 0.0
  %1420 = vmatpush1.msra.mxu0 0.0
  %1421 = vmatprep.subr.mxu0 0.0
  %1422 = vmatpush1.msra.mxu0 0.0
  %1423 = vmatprep.subr.mxu0 0.0
  %1424 = vmatpush1.msra.mxu0 0.0
  %1425 = vmatprep.subr.mxu0 0.0
  %1426 = vmatpush1.msra.mxu0 0.0
  %1427 = vmatprep.subr.mxu0 0.0
  %1428 = vmatpush1.msra.mxu0 0.0
  %1429 = vmatprep.subr.mxu0 0.0
  %1430 = vmatpush1.msra.mxu0 %v1390
  %1431 = vmatprep.subr.mxu0 0.0
  %1432 = vmatpush1.msra.mxu0 %v1389
  %1433 = vmatprep.subr.mxu0 0.0
  %1434 = vmatpush1.msra.mxu0 %v1388
  %1435 = vmatprep.subr.mxu0 0.0
  %1436 = vmatpush1.msra.mxu0 %v1387
  %1437 = vmatprep.subr.mxu0 0.0
  %1438 = vmatpush2.msra.mxu0 0.0
  %1439 = vmatprep.subr.mxu0 0.0
  %1440 = vmatpush2.msra.mxu0 0.0
  %1441 = vmatprep.subr.mxu0 0.0
  %1442 = vmatpush2.msra.mxu0 0.0
  %1443 = vmatprep.subr.mxu0 0.0
  %1444 = vmatpush2.msra.mxu0 0.0
  %1445 = vmatprep.subr.mxu0 0.0
  %1446 = vmatpush2.msra.mxu0 0.0
  %1447 = vmatprep.subr.mxu0 0.0
  %1448 = vmatpush2.msra.mxu0 0.0
  %1449 = vmatprep.subr.mxu0 0.0
  %1450 = vmatpush2.msra.mxu0 0.0
  %1451 = vmatprep.subr.mxu0 0.0
  %1452 = vmatpush2.msra.mxu0 0.0
  %1453 = vmatprep.subr.mxu0 0.0
  %1454 = vmatpush2.msra.mxu0 0.0
  %1455 = vmatprep.subr.mxu0 0.0
  %1456 = vmatpush2.msra.mxu0 0.0
  %1457 = vmatprep.subr.mxu0 0.0
  %1458 = vmatpush2.msra.mxu0 0.0
  %1459 = vmatprep.subr.mxu0 0.0
  %1460 = vmatpush2.msra.mxu0 0.0
  %1461 = vmatprep.subr.mxu0 0.0
  %1462 = vmatpush2.msra.mxu0 0.0
  %1463 = vmatprep.subr.mxu0 0.0
  %1464 = vmatpush2.msra.mxu0 0.0
  %1465 = vmatprep.subr.mxu0 0.0
  %1466 = vmatpush2.msra.mxu0 0.0
  %1467 = vmatprep.subr.mxu0 0.0
  %1468 = vmatpush2.msra.mxu0 0.0
  %1469 = vmatprep.mubr.f32.mxu0 0.0
  %1470 = vmatmul.mubr.f32.gmra.mxu0 %v1403
  %v1471 = vpop.f32.mrf.mxu0
  %v1472 = vadd.f32 0.0, %v1471
  %v1473 = vpop.f32.mrf.mxu0
  %1474 = vdwg.mxu0
  %v1475 = vlaneseq
  %v1476 = vshrl.u32 %v1475, 7
  %v1477 = vsub.s32 0, %v1476
  %v1478 = vrot.slane %v1391, %v1477
  %v1479 = vadd.f32 %v1399, %v1478
  %v1480 = vmul.f32 %v1472, 2.0
  %v1481 = vsub.f32 %v1479, %v1480
  %v1482 = vmax.f32 %v1481, 0.0
  %v1483 = vrsqrt.pop %v1482
  %v1484 = vmul.f32 %v1482, %v1483
  %vm1485 = vcmp.eq.f32.partialorder %v1482, inf
  %v1486 = vsel %vm1485, %v1482, %v1484
  %vm1487 = vcmp.eq.f32.partialorder %v1482, 0.0
  %v1488 = vand.u32 %v1482, 2147483648
  %v1489 = vsel %vm1487, %v1488, %v1486
  %v1490 = vlaneseq
  %v1491 = vshrl.u32 %v1490, 7
  %v1492 = vsub.s32 2, %v1491
  %v1493 = vrot.slane %v1391, %v1492
  %v1494 = vmul.f32 %v1493, %v1489
  %v1495 = vadd.f32 %v1494, 1.0
  %v1496 = vlaneseq
  %v1497 = vshrl.u32 %v1496, 7
  %v1498 = vsub.s32 3, %v1497
  %v1499 = vrot.slane %v1391, %v1498
  %v1500 = vmul.f32 %v1499, %v1482
  %v1501 = vadd.f32 %v1495, %v1500
  %v1502 = vsub.f32 0.0, %v1494
  %v1503 = vmul.f32 %v1502, 1.442695
  %v1504 = vpow.pop %v1503
  %v1505 = vmul.f32 %v1501, %v1504
  %v1506 = vlaneseq
  %v1507 = vshrl.u32 %v1506, 7
  %v1508 = vsub.s32 4, %v1507
  %v1509 = vrot.slane %v1391, %v1508
  %v1510 = vmul.f32 %v1509, %v1482
  %v1511 = vmul.f32 %v1510, 1.442695
  %v1512 = vpow.pop %v1511
  %v1513 = vadd.f32 %v1505, %v1512
  %v1514 = vlaneseq
  %v1515 = vshrl.u32 %v1514, 7
  %v1516 = vsub.s32 1, %v1515
  %v1517 = vrot.slane %v1391, %v1516
  %v1518 = vmul.f32 %v1513, %v1517
  %vm1519 = vcmask 130048
  %v1520 = vsel %vm1519, %v1518, 0.0
  %1521 = vadd.xlane.f32.xlu0 %v1520
  %v1522 = vpop.xlane.xlu0 %1521
  %v1523 = vlaneseq
  %v1524 = vshrl.u32 %v1523, 7
  %v1525 = vsub.s32 5, %v1524
  %v1526 = vrot.slane %v1391, %v1525
  %v1527 = vadd.f32 %v1522, %v1526
  %1529 = vset.pattern.permute.xlu0 0
  %1530 = vperm.xlu0 %1529, %v1527
  %v1531 = vpop.permute.xlu0 %1530
  %1533 = vst [vmem:[%s3] sm:$0xff] %v1531
  // Predicated region
  $region14: #{residual_model_svgp_forward.1} parent=0 // pred_check
    _
  $region15: #{residual_model_svgp_forward.1} parent=0 // pred_check_branch
    %1535 = sbr.rel (0) target = $region17
  $region16: #{residual_model_svgp_forward.1} parent=0 // pred_region
    _
  $region17: #{residual_model_svgp_forward.1} parent=0 // pred_fallthru
    _
  // Predicated region
  $region18: #{residual_model_svgp_forward.1} parent=0 // pred_check
    _
  $region19: #{residual_model_svgp_forward.1} parent=0 // pred_check_branch
    %1537 = sbr.rel (0) target = $region21
  $region20: #{residual_model_svgp_forward.1} parent=0 // pred_region
    _
  $region21: #{residual_model_svgp_forward.1} parent=0 // pred_fallthru
    _

</llo_original>
